<compile_context>
chip_gen: v7x
topology: tpu7x:2x2x1
jax: 0.10.0
libtpu: 0.0.40
codegen_flags: <defaults>
</compile_context>

<pallas_src>
import jax
import jax.numpy as jnp
from jax.experimental import pallas as pl
from jax.experimental.pallas import tpu as pltpu


def _round_up(x, m):
    return (x + m - 1) // m * m


def _pad2(a, rows, cols):
    pr, pc = rows - a.shape[0], cols - a.shape[1]
    if pr == 0 and pc == 0:
        return a
    return jnp.pad(a, ((0, pr), (0, pc)))


def _vmem_ceiling_bytes():
    """Generation-aware VMEM ceiling: ~75% of physical, capped at 96 MiB."""
    cap = 64 << 20  # conservative default = v7x physical VMEM
    try:
        info = pltpu.get_tpu_info()
        cap = int(getattr(info, "vmem_capacity_bytes", cap) or cap)
    except Exception:
        pass
    return int(min(cap * 3 // 4, 96 << 20))


def mlp_kernel(x_ref,
               w0_ref, b0_ref,
               w1_ref, b1_ref,
               w2_ref, b2_ref,
               w3_ref, b3_ref,
               o_ref):
    """Fused 4-layer MLP for one batch tile.

    bf16 operands feed the MXU with f32 accumulation; bias-add and ReLU are
    done in f32 (v5e-safe); activations are cast back to bf16 between layers.
    """
    h = x_ref[...].astype(jnp.bfloat16)          # in-kernel cast, hidden under MXU

    h = jnp.dot(h, w0_ref[...], preferred_element_type=jnp.float32) + b0_ref[...]
    h = jnp.maximum(h, 0.0).astype(jnp.bfloat16)

    h = jnp.dot(h, w1_ref[...], preferred_element_type=jnp.float32) + b1_ref[...]
    h = jnp.maximum(h, 0.0).astype(jnp.bfloat16)

    h = jnp.dot(h, w2_ref[...], preferred_element_type=jnp.float32) + b2_ref[...]
    h = jnp.maximum(h, 0.0).astype(jnp.bfloat16)

    out = jnp.dot(h, w3_ref[...], preferred_element_type=jnp.float32) + b3_ref[...]
    o_ref[...] = out.astype(o_ref.dtype)


# Lazily learned: does this Pallas build accept pl.Buffered(1) on resident specs?
_BUFFERED_WEIGHTS_OK = [True]


def mlp_forward(x, params, *, tile_b_target=2048):
    """x: (B, n_feature) f32. params: f32 weights w{i}:(in,out), biases b{i}:(1,out)."""
    B, n_feature = x.shape
    n_hidden = params["w0"].shape[1]
    n_output = params["w3"].shape[1]
    D1, D2 = 512, 256                       # fixed hidden dims of the module

    H_pad = _round_up(n_hidden, 128)        # lane-dense intermediate dim

    # ---- batch tiling: big tiles (multiple of 16 for bf16 sublane packing),
    #      >= 2 steps when possible and an even step count so v7x's two
    #      TensorCores split the "parallel" axis evenly ----------------------
    B_ALIGN = 16
    B_al = _round_up(B, B_ALIGN)
    tile_b = min(tile_b_target, max(B_ALIGN, _round_up(pl.cdiv(B_al, 2), B_ALIGN)))
    n_steps = pl.cdiv(B_al, tile_b)
    if n_steps > 1 and n_steps % 2 == 1:
        n_steps += 1
        tile_b = max(B_ALIGN, _round_up(pl.cdiv(B_al, n_steps), B_ALIGN))
    B_pad = _round_up(B_al, tile_b)
    grid = (B_pad // tile_b,)

    # ---- operands: x stays f32/unpadded in the feature dim; only the batch
    #      is padded.  Weights go bf16 (zero padding preserves the math). ----
    x_p = x if B_pad == B else jnp.pad(x, ((0, B_pad - B), (0, 0)))
    w0 = _pad2(params["w0"], n_feature, H_pad).astype(jnp.bfloat16)
    b0 = _pad2(params["b0"], 1, H_pad)                    # biases stay f32
    w1 = _pad2(params["w1"], H_pad, D1).astype(jnp.bfloat16)
    b1 = params["b1"]
    w2 = params["w2"].astype(jnp.bfloat16)                # (512, 256)
    b2 = params["b2"]
    w3 = params["w3"].astype(jnp.bfloat16)                # (256, n_output) unpadded
    b3 = params["b3"]

    # ---- scheduler hint ----------------------------------------------------
    flops = 2 * B_pad * (n_feature * H_pad + H_pad * D1 + D1 * D2 + D2 * n_output)
    bytes_accessed = (4 * x_p.size
                      + 2 * (w0.size + w1.size + w2.size + w3.size)
                      + 4 * (b0.size + b1.size + b2.size + b3.size)
                      + 4 * B_pad * n_output)
    cost = pl.CostEstimate(flops=int(flops), transcendentals=0,
                           bytes_accessed=int(bytes_accessed))

    # ---- generation-aware VMEM budget, tracking the final tile_b -----------
    w_bytes = 2 * (w0.size + w1.size + w2.size + w3.size)
    bias_bytes = 4 * (b0.size + b1.size + b2.size + b3.size)
    io_bytes = 2 * 4 * tile_b * (n_feature + n_output)    # double-buffered x/out tiles
    act_bytes = 8 * tile_b * (H_pad + D1 + D2 + 128)      # f32+bf16 intermediates (upper bound)
    vmem_need = 2 * (w_bytes + bias_bytes) + io_bytes + act_bytes
    vmem_limit = int(min(max(vmem_need, 16 << 20), _vmem_ceiling_bytes()))

    def run(weight_pipeline_mode):
        rep2 = lambda i: (0, 0)
        wkw = ({} if weight_pipeline_mode is None
               else {"pipeline_mode": weight_pipeline_mode})
        in_specs = [
            pl.BlockSpec((tile_b, n_feature), lambda i: (i, 0)),      # x tile (f32, unpadded F)
            pl.BlockSpec(w0.shape, rep2, **wkw), pl.BlockSpec(b0.shape, rep2, **wkw),
            pl.BlockSpec(w1.shape, rep2, **wkw), pl.BlockSpec(b1.shape, rep2, **wkw),
            pl.BlockSpec(w2.shape, rep2, **wkw), pl.BlockSpec(b2.shape, rep2, **wkw),
            pl.BlockSpec(w3.shape, rep2, **wkw), pl.BlockSpec(b3.shape, rep2, **wkw),
        ]
        out_spec = pl.BlockSpec((tile_b, n_output), lambda i: (i, 0))  # unpadded output
        out = pl.pallas_call(
            mlp_kernel,
            out_shape=jax.ShapeDtypeStruct((B_pad, n_output), jnp.float32),
            grid_spec=pltpu.PrefetchScalarGridSpec(
                num_scalar_prefetch=0,
                grid=grid,
                in_specs=in_specs,
                out_specs=out_spec,
            ),
            compiler_params=pltpu.CompilerParams(
                dimension_semantics=("parallel",),
                vmem_limit_bytes=vmem_limit,
            ),
            cost_estimate=cost,
        )(x_p, w0, b0, w1, b1, w2, b2, w3, b3)
        return jax.block_until_ready(out)

    if _BUFFERED_WEIGHTS_OK[0]:
        try:
            # single-buffer the resident weights/biases (VMEM headroom, esp. v7x)
            out_padded = run(pl.Buffered(1))
        except Exception:
            _BUFFERED_WEIGHTS_OK[0] = False
            out_padded = run(None)
    else:
        out_padded = run(None)

    return out_padded[:B, :].astype(x.dtype)


def init_params(key, n_feature, n_hidden, n_output):
    """PyTorch-Linear-style init. Weights stored as (in, out) = torch weight.T."""
    dims = [(n_feature, n_hidden), (n_hidden, 512), (512, 256), (256, n_output)]
    params = {}
    for idx, (fan_in, fan_out) in enumerate(dims):
        key, kw, kb = jax.random.split(key, 3)
        bound = 1.0 / jnp.sqrt(fan_in)
        params[f"w{idx}"] = jax.random.uniform(
            kw, (fan_in, fan_out), jnp.float32, -bound, bound)
        params[f"b{idx}"] = jax.random.uniform(
            kb, (1, fan_out), jnp.float32, -bound, bound)
    return params


def mlp_reference(x, params):
    """Pure-JAX reference mirroring the kernel's bf16 rounding, f32 accumulation."""
    # TODO(synk): bf16 operand rounding deviates slightly from true f32 nn.Linear;
    # acceptable here, validate accuracy if this MLP ever needs exact f32.
    def bf(a):
        return a.astype(jnp.bfloat16).astype(jnp.float32)

    h = bf(x)
    for idx in range(4):
        h = h @ bf(params[f"w{idx}"]) + params[f"b{idx}"]
        if idx < 3:
            h = bf(jnp.maximum(h, 0.0))
    return h


if __name__ == "__main__":
    key = jax.random.PRNGKey(0)
    B, n_feature, n_hidden, n_output = 8, 32, 64, 16

    key, kx = jax.random.split(key)
    x = jax.random.normal(kx, (B, n_feature), jnp.float32)
    params = init_params(key, n_feature, n_hidden, n_output)

    out = jax.block_until_ready(mlp_forward(x, params))
    ref = mlp_reference(x, params)
    assert out.shape == (B, n_output), out.shape
    assert jnp.allclose(out, ref, atol=1e-2, rtol=1e-2), "mismatch vs reference (B=8)"

    # Exercise a multi-step grid with a partial final batch tile.
    key, kx2 = jax.random.split(key)
    x2 = jax.random.normal(kx2, (40, n_feature), jnp.float32)
    out2 = jax.block_until_ready(mlp_forward(x2, params))
    ref2 = mlp_reference(x2, params)
    assert out2.shape == (40, n_output), out2.shape
    assert jnp.allclose(out2, ref2, atol=1e-2, rtol=1e-2), "mismatch vs reference (B=40)"

    print("KERNEL_OK")
</pallas_src>

<mosaic_0001>
module attributes {stable_mosaic.version = 11 : i64} {
  func.func @mlp_kernel(%arg0: i32, %arg1: memref<16x32xf32, #tpu.memory_space<vmem>>, %arg2: memref<32x128xbf16, #tpu.memory_space<vmem>>, %arg3: memref<1x128xf32, #tpu.memory_space<vmem>>, %arg4: memref<128x512xbf16, #tpu.memory_space<vmem>>, %arg5: memref<1x512xf32, #tpu.memory_space<vmem>>, %arg6: memref<512x256xbf16, #tpu.memory_space<vmem>>, %arg7: memref<1x256xf32, #tpu.memory_space<vmem>>, %arg8: memref<256x16xbf16, #tpu.memory_space<vmem>>, %arg9: memref<1x16xf32, #tpu.memory_space<vmem>>, %arg10: memref<16x16xf32, #tpu.memory_space<vmem>>) attributes {dimension_semantics = [#tpu.dimension_semantics<parallel>], iteration_bounds = array<i64: 1>, scalar_prefetch = 0 : i64, scratch_operands = 0 : i64, tpu.core_type = #tpu.core_type<tc>, window_params = [{transform_indices = @transform_0, window_bounds = array<i64: 16, 32>}, {pipeline_mode = #tpu.pipeline_mode<synchronous>, transform_indices = @transform_1, window_bounds = array<i64: 32, 128>}, {pipeline_mode = #tpu.pipeline_mode<synchronous>, transform_indices = @transform_2, window_bounds = array<i64: 1, 128>}, {pipeline_mode = #tpu.pipeline_mode<synchronous>, transform_indices = @transform_3, window_bounds = array<i64: 128, 512>}, {pipeline_mode = #tpu.pipeline_mode<synchronous>, transform_indices = @transform_4, window_bounds = array<i64: 1, 512>}, {pipeline_mode = #tpu.pipeline_mode<synchronous>, transform_indices = @transform_5, window_bounds = array<i64: 512, 256>}, {pipeline_mode = #tpu.pipeline_mode<synchronous>, transform_indices = @transform_6, window_bounds = array<i64: 1, 256>}, {pipeline_mode = #tpu.pipeline_mode<synchronous>, transform_indices = @transform_7, window_bounds = array<i64: 256, 16>}, {pipeline_mode = #tpu.pipeline_mode<synchronous>, transform_indices = @transform_8, window_bounds = array<i64: 1, 16>}, {transform_indices = @transform_9, window_bounds = array<i64: 16, 16>}]} {
    %c0 = arith.constant 0 : index
    %c0_0 = arith.constant 0 : index
    %0 = vector.load %arg1[%c0, %c0_0] : memref<16x32xf32, #tpu.memory_space<vmem>>, vector<16x32xf32>
    %1 = arith.truncf %0 : vector<16x32xf32> to vector<16x32xbf16>
    %c0_1 = arith.constant 0 : index
    %c0_2 = arith.constant 0 : index
    %2 = vector.load %arg2[%c0_1, %c0_2] : memref<32x128xbf16, #tpu.memory_space<vmem>>, vector<32x128xbf16>
    %cst = arith.constant dense<0.000000e+00> : vector<16x128xf32>
    %3 = tpu.matmul %1, %2, %cst {dimension_numbers = #tpu.dot_dimension_numbers<[1], [0], [0], [1], [0, 0, 1, 1], [], []>} : vector<16x32xbf16>, vector<32x128xbf16>, vector<16x128xf32> -> vector<16x128xf32>
    %c0_3 = arith.constant 0 : index
    %c0_4 = arith.constant 0 : index
    %4 = vector.load %arg3[%c0_3, %c0_4] : memref<1x128xf32, #tpu.memory_space<vmem>>, vector<1x128xf32>
    %5 = vector.broadcast %4 : vector<1x128xf32> to vector<16x128xf32>
    %6 = arith.addf %3, %5 : vector<16x128xf32>
    %cst_5 = arith.constant 0.000000e+00 : f32
    %7 = vector.broadcast %cst_5 : f32 to vector<16x128xf32>
    %8 = arith.maximumf %6, %7 : vector<16x128xf32>
    %9 = arith.truncf %8 : vector<16x128xf32> to vector<16x128xbf16>
    %c0_6 = arith.constant 0 : index
    %c0_7 = arith.constant 0 : index
    %10 = vector.load %arg4[%c0_6, %c0_7] : memref<128x512xbf16, #tpu.memory_space<vmem>>, vector<128x512xbf16>
    %cst_8 = arith.constant dense<0.000000e+00> : vector<16x512xf32>
    %11 = tpu.matmul %9, %10, %cst_8 {dimension_numbers = #tpu.dot_dimension_numbers<[1], [0], [0], [1], [0, 0, 1, 1], [], []>} : vector<16x128xbf16>, vector<128x512xbf16>, vector<16x512xf32> -> vector<16x512xf32>
    %c0_9 = arith.constant 0 : index
    %c0_10 = arith.constant 0 : index
    %12 = vector.load %arg5[%c0_9, %c0_10] : memref<1x512xf32, #tpu.memory_space<vmem>>, vector<1x512xf32>
    %13 = vector.broadcast %12 : vector<1x512xf32> to vector<16x512xf32>
    %14 = arith.addf %11, %13 : vector<16x512xf32>
    %cst_11 = arith.constant 0.000000e+00 : f32
    %15 = vector.broadcast %cst_11 : f32 to vector<16x512xf32>
    %16 = arith.maximumf %14, %15 : vector<16x512xf32>
    %17 = arith.truncf %16 : vector<16x512xf32> to vector<16x512xbf16>
    %c0_12 = arith.constant 0 : index
    %c0_13 = arith.constant 0 : index
    %18 = vector.load %arg6[%c0_12, %c0_13] : memref<512x256xbf16, #tpu.memory_space<vmem>>, vector<512x256xbf16>
    %cst_14 = arith.constant dense<0.000000e+00> : vector<16x256xf32>
    %19 = tpu.matmul %17, %18, %cst_14 {dimension_numbers = #tpu.dot_dimension_numbers<[1], [0], [0], [1], [0, 0, 1, 1], [], []>} : vector<16x512xbf16>, vector<512x256xbf16>, vector<16x256xf32> -> vector<16x256xf32>
    %c0_15 = arith.constant 0 : index
    %c0_16 = arith.constant 0 : index
    %20 = vector.load %arg7[%c0_15, %c0_16] : memref<1x256xf32, #tpu.memory_space<vmem>>, vector<1x256xf32>
    %21 = vector.broadcast %20 : vector<1x256xf32> to vector<16x256xf32>
    %22 = arith.addf %19, %21 : vector<16x256xf32>
    %cst_17 = arith.constant 0.000000e+00 : f32
    %23 = vector.broadcast %cst_17 : f32 to vector<16x256xf32>
    %24 = arith.maximumf %22, %23 : vector<16x256xf32>
    %25 = arith.truncf %24 : vector<16x256xf32> to vector<16x256xbf16>
    %c0_18 = arith.constant 0 : index
    %c0_19 = arith.constant 0 : index
    %26 = vector.load %arg8[%c0_18, %c0_19] : memref<256x16xbf16, #tpu.memory_space<vmem>>, vector<256x16xbf16>
    %cst_20 = arith.constant dense<0.000000e+00> : vector<16x16xf32>
    %27 = tpu.matmul %25, %26, %cst_20 {dimension_numbers = #tpu.dot_dimension_numbers<[1], [0], [0], [1], [0, 0, 1, 1], [], []>} : vector<16x256xbf16>, vector<256x16xbf16>, vector<16x16xf32> -> vector<16x16xf32>
    %c0_21 = arith.constant 0 : index
    %c0_22 = arith.constant 0 : index
    %28 = vector.load %arg9[%c0_21, %c0_22] : memref<1x16xf32, #tpu.memory_space<vmem>>, vector<1x16xf32>
    %29 = vector.broadcast %28 : vector<1x16xf32> to vector<16x16xf32>
    %30 = arith.addf %27, %29 : vector<16x16xf32>
    %c0_23 = arith.constant 0 : index
    %c0_24 = arith.constant 0 : index
    %31 = vector.load %arg10[%c0_23, %c0_24] : memref<16x16xf32, #tpu.memory_space<vmem>>, vector<16x16xf32>
    tpu.vector_store %arg10[%c0_23, %c0_24], %30 {strides = array<i32>} : memref<16x16xf32, #tpu.memory_space<vmem>>, vector<16x16xf32>,
    return
  }
  func.func @transform_0(%arg0: i32) -> (i32, i32) {
    %c0_i32 = arith.constant 0 : i32
    %c0_i32_0 = arith.constant 0 : i32
    return %arg0, %c0_i32 : i32, i32
  }
  func.func @transform_1(%arg0: i32) -> (i32, i32) {
    %c0_i32 = arith.constant 0 : i32
    %c0_i32_0 = arith.constant 0 : i32
    %c0_i32_1 = arith.constant 0 : i32
    return %c0_i32, %c0_i32_0 : i32, i32
  }
  func.func @transform_2(%arg0: i32) -> (i32, i32) {
    %c0_i32 = arith.constant 0 : i32
    %c0_i32_0 = arith.constant 0 : i32
    %c0_i32_1 = arith.constant 0 : i32
    return %c0_i32, %c0_i32_0 : i32, i32
  }
  func.func @transform_3(%arg0: i32) -> (i32, i32) {
    %c0_i32 = arith.constant 0 : i32
    %c0_i32_0 = arith.constant 0 : i32
    %c0_i32_1 = arith.constant 0 : i32
    return %c0_i32, %c0_i32_0 : i32, i32
  }
  func.func @transform_4(%arg0: i32) -> (i32, i32) {
    %c0_i32 = arith.constant 0 : i32
    %c0_i32_0 = arith.constant 0 : i32
    %c0_i32_1 = arith.constant 0 : i32
    return %c0_i32, %c0_i32_0 : i32, i32
  }
  func.func @transform_5(%arg0: i32) -> (i32, i32) {
    %c0_i32 = arith.constant 0 : i32
    %c0_i32_0 = arith.constant 0 : i32
    %c0_i32_1 = arith.constant 0 : i32
    return %c0_i32, %c0_i32_0 : i32, i32
  }
  func.func @transform_6(%arg0: i32) -> (i32, i32) {
    %c0_i32 = arith.constant 0 : i32
    %c0_i32_0 = arith.constant 0 : i32
    %c0_i32_1 = arith.constant 0 : i32
    return %c0_i32, %c0_i32_0 : i32, i32
  }
  func.func @transform_7(%arg0: i32) -> (i32, i32) {
    %c0_i32 = arith.constant 0 : i32
    %c0_i32_0 = arith.constant 0 : i32
    %c0_i32_1 = arith.constant 0 : i32
    return %c0_i32, %c0_i32_0 : i32, i32
  }
  func.func @transform_8(%arg0: i32) -> (i32, i32) {
    %c0_i32 = arith.constant 0 : i32
    %c0_i32_0 = arith.constant 0 : i32
    %c0_i32_1 = arith.constant 0 : i32
    return %c0_i32, %c0_i32_0 : i32, i32
  }
  func.func @transform_9(%arg0: i32) -> (i32, i32) {
    %c0_i32 = arith.constant 0 : i32
    %c0_i32_0 = arith.constant 0 : i32
    return %arg0, %c0_i32 : i32, i32
  }
}

module attributes {stable_mosaic.version = 11 : i64} {
  func.func @mlp_kernel(%arg0: i32, %arg1: memref<16x32xf32, #tpu.memory_space<vmem>>, %arg2: memref<32x128xbf16, #tpu.memory_space<vmem>>, %arg3: memref<1x128xf32, #tpu.memory_space<vmem>>, %arg4: memref<128x512xbf16, #tpu.memory_space<vmem>>, %arg5: memref<1x512xf32, #tpu.memory_space<vmem>>, %arg6: memref<512x256xbf16, #tpu.memory_space<vmem>>, %arg7: memref<1x256xf32, #tpu.memory_space<vmem>>, %arg8: memref<256x16xbf16, #tpu.memory_space<vmem>>, %arg9: memref<1x16xf32, #tpu.memory_space<vmem>>, %arg10: memref<16x16xf32, #tpu.memory_space<vmem>>) attributes {dimension_semantics = [#tpu.dimension_semantics<parallel>], iteration_bounds = array<i64: 1>, scalar_prefetch = 0 : i64, scratch_operands = 0 : i64, tpu.core_type = #tpu.core_type<tc>, window_params = [{transform_indices = @transform_0, window_bounds = array<i64: 16, 32>}, {pipeline_mode = #tpu.pipeline_mode<synchronous>, transform_indices = @transform_1, window_bounds = array<i64: 32, 128>}, {pipeline_mode = #tpu.pipeline_mode<synchronous>, transform_indices = @transform_2, window_bounds = array<i64: 1, 128>}, {pipeline_mode = #tpu.pipeline_mode<synchronous>, transform_indices = @transform_3, window_bounds = array<i64: 128, 512>}, {pipeline_mode = #tpu.pipeline_mode<synchronous>, transform_indices = @transform_4, window_bounds = array<i64: 1, 512>}, {pipeline_mode = #tpu.pipeline_mode<synchronous>, transform_indices = @transform_5, window_bounds = array<i64: 512, 256>}, {pipeline_mode = #tpu.pipeline_mode<synchronous>, transform_indices = @transform_6, window_bounds = array<i64: 1, 256>}, {pipeline_mode = #tpu.pipeline_mode<synchronous>, transform_indices = @transform_7, window_bounds = array<i64: 256, 16>}, {pipeline_mode = #tpu.pipeline_mode<synchronous>, transform_indices = @transform_8, window_bounds = array<i64: 1, 16>}, {transform_indices = @transform_9, window_bounds = array<i64: 16, 16>}]} {
    %c0 = arith.constant 0 : index
    %c0_0 = arith.constant 0 : index
    %0 = vector.load %arg1[%c0, %c0_0] : memref<16x32xf32, #tpu.memory_space<vmem>>, vector<16x32xf32>
    %1 = arith.truncf %0 : vector<16x32xf32> to vector<16x32xbf16>
    %c0_1 = arith.constant 0 : index
    %c0_2 = arith.constant 0 : index
    %2 = vector.load %arg2[%c0_1, %c0_2] : memref<32x128xbf16, #tpu.memory_space<vmem>>, vector<32x128xbf16>
    %cst = arith.constant dense<0.000000e+00> : vector<16x128xf32>
    %3 = tpu.matmul %1, %2, %cst {dimension_numbers = #tpu.dot_dimension_numbers<[1], [0], [0], [1], [0, 0, 1, 1], [], []>} : vector<16x32xbf16>, vector<32x128xbf16>, vector<16x128xf32> -> vector<16x128xf32>
    %c0_3 = arith.constant 0 : index
    %c0_4 = arith.constant 0 : index
    %4 = vector.load %arg3[%c0_3, %c0_4] : memref<1x128xf32, #tpu.memory_space<vmem>>, vector<1x128xf32>
    %5 = vector.broadcast %4 : vector<1x128xf32> to vector<16x128xf32>
    %6 = arith.addf %3, %5 : vector<16x128xf32>
    %cst_5 = arith.constant 0.000000e+00 : f32
    %7 = vector.broadcast %cst_5 : f32 to vector<16x128xf32>
    %8 = arith.maximumf %6, %7 : vector<16x128xf32>
    %9 = arith.truncf %8 : vector<16x128xf32> to vector<16x128xbf16>
    %c0_6 = arith.constant 0 : index
    %c0_7 = arith.constant 0 : index
    %10 = vector.load %arg4[%c0_6, %c0_7] : memref<128x512xbf16, #tpu.memory_space<vmem>>, vector<128x512xbf16>
    %cst_8 = arith.constant dense<0.000000e+00> : vector<16x512xf32>
    %11 = tpu.matmul %9, %10, %cst_8 {dimension_numbers = #tpu.dot_dimension_numbers<[1], [0], [0], [1], [0, 0, 1, 1], [], []>} : vector<16x128xbf16>, vector<128x512xbf16>, vector<16x512xf32> -> vector<16x512xf32>
    %c0_9 = arith.constant 0 : index
    %c0_10 = arith.constant 0 : index
    %12 = vector.load %arg5[%c0_9, %c0_10] : memref<1x512xf32, #tpu.memory_space<vmem>>, vector<1x512xf32>
    %13 = vector.broadcast %12 : vector<1x512xf32> to vector<16x512xf32>
    %14 = arith.addf %11, %13 : vector<16x512xf32>
    %cst_11 = arith.constant 0.000000e+00 : f32
    %15 = vector.broadcast %cst_11 : f32 to vector<16x512xf32>
    %16 = arith.maximumf %14, %15 : vector<16x512xf32>
    %17 = arith.truncf %16 : vector<16x512xf32> to vector<16x512xbf16>
    %c0_12 = arith.constant 0 : index
    %c0_13 = arith.constant 0 : index
    %18 = vector.load %arg6[%c0_12, %c0_13] : memref<512x256xbf16, #tpu.memory_space<vmem>>, vector<512x256xbf16>
    %cst_14 = arith.constant dense<0.000000e+00> : vector<16x256xf32>
    %19 = tpu.matmul %17, %18, %cst_14 {dimension_numbers = #tpu.dot_dimension_numbers<[1], [0], [0], [1], [0, 0, 1, 1], [], []>} : vector<16x512xbf16>, vector<512x256xbf16>, vector<16x256xf32> -> vector<16x256xf32>
    %c0_15 = arith.constant 0 : index
    %c0_16 = arith.constant 0 : index
    %20 = vector.load %arg7[%c0_15, %c0_16] : memref<1x256xf32, #tpu.memory_space<vmem>>, vector<1x256xf32>
    %21 = vector.broadcast %20 : vector<1x256xf32> to vector<16x256xf32>
    %22 = arith.addf %19, %21 : vector<16x256xf32>
    %cst_17 = arith.constant 0.000000e+00 : f32
    %23 = vector.broadcast %cst_17 : f32 to vector<16x256xf32>
    %24 = arith.maximumf %22, %23 : vector<16x256xf32>
    %25 = arith.truncf %24 : vector<16x256xf32> to vector<16x256xbf16>
    %c0_18 = arith.constant 0 : index
    %c0_19 = arith.constant 0 : index
    %26 = vector.load %arg8[%c0_18, %c0_19] : memref<256x16xbf16, #tpu.memory_space<vmem>>, vector<256x16xbf16>
    %cst_20 = arith.constant dense<0.000000e+00> : vector<16x16xf32>
    %27 = tpu.matmul %25, %26, %cst_20 {dimension_numbers = #tpu.dot_dimension_numbers<[1], [0], [0], [1], [0, 0, 1, 1], [], []>} : vector<16x256xbf16>, vector<256x16xbf16>, vector<16x16xf32> -> vector<16x16xf32>
    %c0_21 = arith.constant 0 : index
    %c0_22 = arith.constant 0 : index
    %28 = vector.load %arg9[%c0_21, %c0_22] : memref<1x16xf32, #tpu.memory_space<vmem>>, vector<1x16xf32>
    %29 = vector.broadcast %28 : vector<1x16xf32> to vector<16x16xf32>
    %30 = arith.addf %27, %29 : vector<16x16xf32>
    %c0_23 = arith.constant 0 : index
    %c0_24 = arith.constant 0 : index
    %31 = vector.load %arg10[%c0_23, %c0_24] : memref<16x16xf32, #tpu.memory_space<vmem>>, vector<16x16xf32>
    tpu.vector_store %arg10[%c0_23, %c0_24], %30 {strides = array<i32>} : memref<16x16xf32, #tpu.memory_space<vmem>>, vector<16x16xf32>,
    return
  }
  func.func @transform_0(%arg0: i32) -> (i32, i32) {
    %c0_i32 = arith.constant 0 : i32
    %c0_i32_0 = arith.constant 0 : i32
    return %arg0, %c0_i32 : i32, i32
  }
  func.func @transform_1(%arg0: i32) -> (i32, i32) {
    %c0_i32 = arith.constant 0 : i32
    %c0_i32_0 = arith.constant 0 : i32
    %c0_i32_1 = arith.constant 0 : i32
    return %c0_i32, %c0_i32_0 : i32, i32
  }
  func.func @transform_2(%arg0: i32) -> (i32, i32) {
    %c0_i32 = arith.constant 0 : i32
    %c0_i32_0 = arith.constant 0 : i32
    %c0_i32_1 = arith.constant 0 : i32
    return %c0_i32, %c0_i32_0 : i32, i32
  }
  func.func @transform_3(%arg0: i32) -> (i32, i32) {
    %c0_i32 = arith.constant 0 : i32
    %c0_i32_0 = arith.constant 0 : i32
    %c0_i32_1 = arith.constant 0 : i32
    return %c0_i32, %c0_i32_0 : i32, i32
  }
  func.func @transform_4(%arg0: i32) -> (i32, i32) {
    %c0_i32 = arith.constant 0 : i32
    %c0_i32_0 = arith.constant 0 : i32
    %c0_i32_1 = arith.constant 0 : i32
    return %c0_i32, %c0_i32_0 : i32, i32
  }
  func.func @transform_5(%arg0: i32) -> (i32, i32) {
    %c0_i32 = arith.constant 0 : i32
    %c0_i32_0 = arith.constant 0 : i32
    %c0_i32_1 = arith.constant 0 : i32
    return %c0_i32, %c0_i32_0 : i32, i32
  }
  func.func @transform_6(%arg0: i32) -> (i32, i32) {
    %c0_i32 = arith.constant 0 : i32
    %c0_i32_0 = arith.constant 0 : i32
    %c0_i32_1 = arith.constant 0 : i32
    return %c0_i32, %c0_i32_0 : i32, i32
  }
  func.func @transform_7(%arg0: i32) -> (i32, i32) {
    %c0_i32 = arith.constant 0 : i32
    %c0_i32_0 = arith.constant 0 : i32
    %c0_i32_1 = arith.constant 0 : i32
    return %c0_i32, %c0_i32_0 : i32, i32
  }
  func.func @transform_8(%arg0: i32) -> (i32, i32) {
    %c0_i32 = arith.constant 0 : i32
    %c0_i32_0 = arith.constant 0 : i32
    %c0_i32_1 = arith.constant 0 : i32
    return %c0_i32, %c0_i32_0 : i32, i32
  }
  func.func @transform_9(%arg0: i32) -> (i32, i32) {
    %c0_i32 = arith.constant 0 : i32
    %c0_i32_0 = arith.constant 0 : i32
    return %arg0, %c0_i32 : i32, i32
  }
}

</mosaic_0001>

<llo_original>
// kernel: tpu_custom_call.1
$region0: #{tpu_custom_call.1}
  #allocation0 [shape = 'u32[]', space=smem, size = 0x4, offset = 0x4, fixed_abs, tag = 'smem constant byte address 0x4 - core index']
  #allocation1 [shape = 'u32[144,128]{1,0:T(1,128)}', space=vmem, size = 0x12000, scoped, tag = 'internal scratch']
  %s0 = inlined_call_operand.vmem [shape: f32[16,32], index: 0, kind: input, shape index: {}]
  %s1 = inlined_call_operand.vmem [shape: bf16[32,128], index: 1, kind: input, shape index: {}]
  %s2 = inlined_call_operand.vmem [shape: f32[1,128], index: 2, kind: input, shape index: {}]
  %s3 = inlined_call_operand.hbm [shape: bf16[128,512], index: 3, kind: input, shape index: {}]
  %s4 = inlined_call_operand.vmem [shape: f32[1,512], index: 4, kind: input, shape index: {}]
  %s5 = inlined_call_operand.hbm [shape: bf16[512,256], index: 5, kind: input, shape index: {}]
  %s6 = inlined_call_operand.vmem [shape: f32[1,256], index: 6, kind: input, shape index: {}]
  %s7 = inlined_call_operand.vmem [shape: bf16[256,16], index: 7, kind: input, shape index: {}]
  %s8 = inlined_call_operand.vmem [shape: f32[1,16], index: 8, kind: input, shape index: {}]
  %s9 = inlined_call_operand.hbm [shape: f32[16,16], index: 9, kind: output, shape index: {}]
  %s10 = sld [smem:[#allocation0]]
  $region54: #{tpu_custom_call.1} parent=0
    _
  %s12 = ssub.s32 1, %s10
  %s13 = scalar_select 0, %s12, %s10
  $region1: #{tpu_custom_call.1} parent=0
    #allocation2 [shape = 'u8[131072]{0}', space=vmem, size = 0x20000, scoped, tag = 'input window, operand 3, single buffered']
    #allocation3 [shape = 's32[1]{0}', space=sflag, size = 0x4, scoped, tag = 'scoped memory for tpu_custom_call.1']
    #allocation4 [shape = 's32[1]{0}', space=sflag, size = 0x4, scoped, tag = 'scoped memory for tpu_custom_call.1']
    #allocation5 [shape = 'u8[262144]{0}', space=vmem, size = 0x40000, scoped, tag = 'input window, operand 5, single buffered']
    #allocation6 [shape = 's32[1]{0}', space=sflag, size = 0x4, scoped, tag = 'scoped memory for tpu_custom_call.1']
    #allocation7 [shape = 'u8[8192]{0}', space=vmem, size = 0x2000, scoped, tag = 'output window, operand 0, single buffered']
    %14 = vsyncpa [#allocation3], 0
    %15 = vsyncpa [#allocation6], 0
    %16 = vsyncpa [#allocation4], 0
    // Predicated region
    $region2: #{tpu_custom_call.1} parent=1 // pred_check
      _
    $region3: #{tpu_custom_call.1} parent=1 // pred_check_branch
      %18 = sbr.rel (0) target = $region5
    $region4: #{tpu_custom_call.1} parent=1 // pred_region
      _
    $region5: #{tpu_custom_call.1} parent=1 // pred_fallthru
      _
    // Predicated region
    $region6: #{tpu_custom_call.1} parent=1 // pred_check
      _
    $region7: #{tpu_custom_call.1} parent=1 // pred_check_branch
      %20 = sbr.rel (0) target = $region9
    $region8: #{tpu_custom_call.1} parent=1 // pred_region
      _
    $region9: #{tpu_custom_call.1} parent=1 // pred_fallthru
      _
    // Predicated region
    $region10: #{tpu_custom_call.1} parent=1 // pred_check
      _
    $region11: #{tpu_custom_call.1} parent=1 // pred_check_branch
      %22 = sbr.rel (0) target = $region13
    $region12: #{tpu_custom_call.1} parent=1 // pred_region
      _
    $region13: #{tpu_custom_call.1} parent=1 // pred_fallthru
      _
    // Predicated region
    $region14: #{tpu_custom_call.1} parent=1 // pred_check
      _
    $region15: #{tpu_custom_call.1} parent=1 // pred_check_branch
      %24 = sbr.rel (0) target = $region17
    $region16: #{tpu_custom_call.1} parent=1 // pred_region
      %s26 = ssub.s32 4096, 4096
      %27 = vsyncadd [#allocation3], %s26
      %s28 = sshll.u32 [#allocation2], 4
      %s29 = int_to_ptr.vmem [resolvable:$true] %s28
      %34 = dma.hbm_to_vmem [thread:$0]  %s3, 4096, %s29, [#allocation3], 256, 256, 16
    $region17: #{tpu_custom_call.1} parent=1 // pred_fallthru
      _
    // Predicated region
    $region18: #{tpu_custom_call.1} parent=1 // pred_check
      _
    $region19: #{tpu_custom_call.1} parent=1 // pred_check_branch
      %36 = sbr.rel (0) target = $region21
    $region20: #{tpu_custom_call.1} parent=1 // pred_region
      _
    $region21: #{tpu_custom_call.1} parent=1 // pred_fallthru
      _
    // Predicated region
    $region22: #{tpu_custom_call.1} parent=1 // pred_check
      _
    $region23: #{tpu_custom_call.1} parent=1 // pred_check_branch
      %38 = sbr.rel (0) target = $region25
    $region24: #{tpu_custom_call.1} parent=1 // pred_region
      %s40 = ssub.s32 8192, 8192
      %41 = vsyncadd [#allocation6], %s40
      %s42 = sshll.u32 [#allocation5], 4
      %s43 = int_to_ptr.vmem [resolvable:$true] %s42
      %48 = dma.hbm_to_vmem [thread:$0]  %s5, 8192, %s43, [#allocation6], 128, 128, 8
    $region25: #{tpu_custom_call.1} parent=1 // pred_fallthru
      _
    // Predicated region
    $region26: #{tpu_custom_call.1} parent=1 // pred_check
      _
    $region27: #{tpu_custom_call.1} parent=1 // pred_check_branch
      %50 = sbr.rel (0) target = $region29
    $region28: #{tpu_custom_call.1} parent=1 // pred_region
      _
    $region29: #{tpu_custom_call.1} parent=1 // pred_fallthru
      _
    // Predicated region
    $region30: #{tpu_custom_call.1} parent=1 // pred_check
      _
    $region31: #{tpu_custom_call.1} parent=1 // pred_check_branch
      %52 = sbr.rel (0) target = $region33
    $region32: #{tpu_custom_call.1} parent=1 // pred_region
      _
    $region33: #{tpu_custom_call.1} parent=1 // pred_fallthru
      _
    // Predicated region
    $region34: #{tpu_custom_call.1} parent=1 // pred_check
      _
    $region35: #{tpu_custom_call.1} parent=1 // pred_check_branch
      %54 = sbr.rel (0) target = $region37
    $region36: #{tpu_custom_call.1} parent=1 // pred_region
      _
    $region37: #{tpu_custom_call.1} parent=1 // pred_fallthru
      _
    // Predicated region
    $region38: #{tpu_custom_call.1} parent=1 // pred_check
      _
    $region39: #{tpu_custom_call.1} parent=1 // pred_check_branch
      %56 = sbr.rel (0) target = $region41
    $region40: #{tpu_custom_call.1} parent=1 // pred_region
      %57 = dma.done [#allocation3], 4096
    $region41: #{tpu_custom_call.1} parent=1 // pred_fallthru
      _
    // Predicated region
    $region42: #{tpu_custom_call.1} parent=1 // pred_check
      _
    $region43: #{tpu_custom_call.1} parent=1 // pred_check_branch
      %59 = sbr.rel (0) target = $region45
    $region44: #{tpu_custom_call.1} parent=1 // pred_region
      %60 = dma.done [#allocation6], 8192
    $region45: #{tpu_custom_call.1} parent=1 // pred_fallthru
      _
    %v62 = vld [vmem:[%s0] sm:$0xff]
    %v63 = vld [vmem:[%s0 + $0x8] sm:$0xff]
    %v64 = vpack.c.bf16 %v63, %v62
    %v65 = vld [vmem:[%s1] sm:$0xf]
    %v66 = vld [vmem:[%s1 + $0x4] sm:$0xf]
    %v67 = vld [vmem:[%s1 + $0x8] sm:$0xf]
    %v68 = vld [vmem:[%s1 + $0xc] sm:$0xf]
    %v69 = vld [vmem:[%s2] sm:$0x1]
    %v71 = vlaneseq
    %v72 = vshrl.u32 %v71, 7
    %v73 = vsub.s32 0, %v72
    %v74 = vrot.slane %v69, %v73
    %v80 = vunpack.c.l.b16 %v65
    %v81 = vunpack.c.l.b16 %v66
    %v82 = vunpack.c.l.b16 %v67
    %v83 = vunpack.c.l.b16 %v68
    %v84 = vpack.c.b16 %v81, %v80
    %v85 = vpack.c.b16 %v83, %v82
    %vm88 = vcmask 261120
    %v90 = vsel %vm88, %v64, 0
    %92 = vmatprep.subr.bf16.mxu0 0
    %93 = vmatpush1.bf16.msra.mxu0 %v84
    %94 = vmatprep.subr.bf16.mxu0 0
    %95 = vmatpush1.bf16.msra.mxu0 %v85
    %96 = vmatprep.subr.bf16.mxu0 0
    %97 = vmatpush1.bf16.msra.mxu0 0
    %98 = vmatprep.subr.bf16.mxu0 0
    %99 = vmatpush1.bf16.msra.mxu0 0
    %100 = vmatprep.subr.bf16.mxu0 0
    %101 = vmatpush1.bf16.msra.mxu0 0
    %102 = vmatprep.subr.bf16.mxu0 0
    %103 = vmatpush1.bf16.msra.mxu0 0
    %104 = vmatprep.subr.bf16.mxu0 0
    %105 = vmatpush1.bf16.msra.mxu0 0
    %106 = vmatprep.subr.bf16.mxu0 0
    %107 = vmatpush1.bf16.msra.mxu0 0
    %108 = vmatprep.subr.bf16.mxu0 0
    %109 = vmatpush1.bf16.msra.mxu0 0
    %110 = vmatprep.subr.bf16.mxu0 0
    %111 = vmatpush1.bf16.msra.mxu0 0
    %112 = vmatprep.subr.bf16.mxu0 0
    %113 = vmatpush1.bf16.msra.mxu0 0
    %114 = vmatprep.subr.bf16.mxu0 0
    %115 = vmatpush1.bf16.msra.mxu0 0
    %116 = vmatprep.subr.bf16.mxu0 0
    %117 = vmatpush1.bf16.msra.mxu0 0
    %118 = vmatprep.subr.bf16.mxu0 0
    %119 = vmatpush1.bf16.msra.mxu0 0
    %120 = vmatprep.subr.bf16.mxu0 0
    %121 = vmatpush1.bf16.msra.mxu0 0
    %122 = vmatprep.subr.bf16.mxu0 0
    %123 = vmatpush1.bf16.msra.mxu0 0
    %124 = vmatprep.mubr.bf16.mxu0 0
    %125 = vmatmul.mubr.bf16.gmra.mrb[0].mxu0 %v90
    %v126 = vpop.f32.mrb[0].mxu0
    %v127 = vadd.f32 %v74, %v126
    %v128 = vpop.f32.mrb[0].mxu0
    %v129 = vpop.f32.mrb[0].mxu0
    %v130 = vadd.f32 %v74, %v129
    %v131 = vpop.f32.mrb[0].mxu0
    %132 = vdwg.mxu0
    %v133 = vmax.f32 %v127, 0.0
    %v134 = vmax.f32 %v130, 0.0
    %v135 = vpack.c.bf16 %v134, %v133
    %v136 = vld [vmem:[#allocation2] sm:$0xff]
    %v137 = vld [vmem:[#allocation2 + $0x8] sm:$0xff]
    %v138 = vld [vmem:[#allocation2 + $0x10] sm:$0xff]
    %v139 = vld [vmem:[#allocation2 + $0x18] sm:$0xff]
    %v140 = vld [vmem:[#allocation2 + $0x20] sm:$0xff]
    %v141 = vld [vmem:[#allocation2 + $0x28] sm:$0xff]
    %v142 = vld [vmem:[#allocation2 + $0x30] sm:$0xff]
    %v143 = vld [vmem:[#allocation2 + $0x38] sm:$0xff]
    %v144 = vld [vmem:[#allocation2 + $0x40] sm:$0xff]
    %v145 = vld [vmem:[#allocation2 + $0x48] sm:$0xff]
    %v146 = vld [vmem:[#allocation2 + $0x50] sm:$0xff]
    %v147 = vld [vmem:[#allocation2 + $0x58] sm:$0xff]
    %v148 = vld [vmem:[#allocation2 + $0x60] sm:$0xff]
    %v149 = vld [vmem:[#allocation2 + $0x68] sm:$0xff]
    %v150 = vld [vmem:[#allocation2 + $0x70] sm:$0xff]
    %v151 = vld [vmem:[#allocation2 + $0x78] sm:$0xff]
    %v152 = vld [vmem:[#allocation2 + $0x80] sm:$0xff]
    %v153 = vld [vmem:[#allocation2 + $0x88] sm:$0xff]
    %v154 = vld [vmem:[#allocation2 + $0x90] sm:$0xff]
    %v155 = vld [vmem:[#allocation2 + $0x98] sm:$0xff]
    %v156 = vld [vmem:[#allocation2 + $0xa0] sm:$0xff]
    %v157 = vld [vmem:[#allocation2 + $0xa8] sm:$0xff]
    %v158 = vld [vmem:[#allocation2 + $0xb0] sm:$0xff]
    %v159 = vld [vmem:[#allocation2 + $0xb8] sm:$0xff]
    %v160 = vld [vmem:[#allocation2 + $0xc0] sm:$0xff]
    %v161 = vld [vmem:[#allocation2 + $0xc8] sm:$0xff]
    %v162 = vld [vmem:[#allocation2 + $0xd0] sm:$0xff]
    %v163 = vld [vmem:[#allocation2 + $0xd8] sm:$0xff]
    %v164 = vld [vmem:[#allocation2 + $0xe0] sm:$0xff]
    %v165 = vld [vmem:[#allocation2 + $0xe8] sm:$0xff]
    %v166 = vld [vmem:[#allocation2 + $0xf0] sm:$0xff]
    %v167 = vld [vmem:[#allocation2 + $0xf8] sm:$0xff]
    %v168 = vld [vmem:[%s4] sm:$0xf]
    %v170 = vlaneseq
    %v171 = vshrl.u32 %v170, 7
    %v172 = vsub.s32 0, %v171
    %v173 = vrot.slane %v168, %v172
    %v174 = vlaneseq
    %v175 = vshrl.u32 %v174, 7
    %v176 = vsub.s32 1, %v175
    %v177 = vrot.slane %v168, %v176
    %v178 = vlaneseq
    %v179 = vshrl.u32 %v178, 7
    %v180 = vsub.s32 2, %v179
    %v181 = vrot.slane %v168, %v180
    %v182 = vlaneseq
    %v183 = vshrl.u32 %v182, 7
    %v184 = vsub.s32 3, %v183
    %v185 = vrot.slane %v168, %v184
    %v222 = vunpack.c.l.b16 %v136
    %v223 = vunpack.c.h.b16 %v136
    %v224 = vunpack.c.l.b16 %v137
    %v225 = vunpack.c.h.b16 %v137
    %v226 = vunpack.c.l.b16 %v138
    %v227 = vunpack.c.h.b16 %v138
    %v228 = vunpack.c.l.b16 %v139
    %v229 = vunpack.c.h.b16 %v139
    %v230 = vunpack.c.l.b16 %v140
    %v231 = vunpack.c.h.b16 %v140
    %v232 = vunpack.c.l.b16 %v141
    %v233 = vunpack.c.h.b16 %v141
    %v234 = vunpack.c.l.b16 %v142
    %v235 = vunpack.c.h.b16 %v142
    %v236 = vunpack.c.l.b16 %v143
    %v237 = vunpack.c.h.b16 %v143
    %v238 = vunpack.c.l.b16 %v144
    %v239 = vunpack.c.h.b16 %v144
    %v240 = vunpack.c.l.b16 %v145
    %v241 = vunpack.c.h.b16 %v145
    %v242 = vunpack.c.l.b16 %v146
    %v243 = vunpack.c.h.b16 %v146
    %v244 = vunpack.c.l.b16 %v147
    %v245 = vunpack.c.h.b16 %v147
    %v246 = vunpack.c.l.b16 %v148
    %v247 = vunpack.c.h.b16 %v148
    %v248 = vunpack.c.l.b16 %v149
    %v249 = vunpack.c.h.b16 %v149
    %v250 = vunpack.c.l.b16 %v150
    %v251 = vunpack.c.h.b16 %v150
    %v252 = vunpack.c.l.b16 %v151
    %v253 = vunpack.c.h.b16 %v151
    %v254 = vunpack.c.l.b16 %v152
    %v255 = vunpack.c.h.b16 %v152
    %v256 = vunpack.c.l.b16 %v153
    %v257 = vunpack.c.h.b16 %v153
    %v258 = vunpack.c.l.b16 %v154
    %v259 = vunpack.c.h.b16 %v154
    %v260 = vunpack.c.l.b16 %v155
    %v261 = vunpack.c.h.b16 %v155
    %v262 = vunpack.c.l.b16 %v156
    %v263 = vunpack.c.h.b16 %v156
    %v264 = vunpack.c.l.b16 %v157
    %v265 = vunpack.c.h.b16 %v157
    %v266 = vunpack.c.l.b16 %v158
    %v267 = vunpack.c.h.b16 %v158
    %v268 = vunpack.c.l.b16 %v159
    %v269 = vunpack.c.h.b16 %v159
    %v270 = vunpack.c.l.b16 %v160
    %v271 = vunpack.c.h.b16 %v160
    %v272 = vunpack.c.l.b16 %v161
    %v273 = vunpack.c.h.b16 %v161
    %v274 = vunpack.c.l.b16 %v162
    %v275 = vunpack.c.h.b16 %v162
    %v276 = vunpack.c.l.b16 %v163
    %v277 = vunpack.c.h.b16 %v163
    %v278 = vunpack.c.l.b16 %v164
    %v279 = vunpack.c.h.b16 %v164
    %v280 = vunpack.c.l.b16 %v165
    %v281 = vunpack.c.h.b16 %v165
    %v282 = vunpack.c.l.b16 %v166
    %v283 = vunpack.c.h.b16 %v166
    %v284 = vunpack.c.l.b16 %v167
    %v285 = vunpack.c.h.b16 %v167
    %v286 = vpack.c.b16 %v226, %v222
    %v287 = vpack.c.b16 %v227, %v223
    %v288 = vpack.c.b16 %v228, %v224
    %v289 = vpack.c.b16 %v229, %v225
    %v290 = vpack.c.b16 %v234, %v230
    %v291 = vpack.c.b16 %v235, %v231
    %v292 = vpack.c.b16 %v236, %v232
    %v293 = vpack.c.b16 %v237, %v233
    %v294 = vpack.c.b16 %v242, %v238
    %v295 = vpack.c.b16 %v243, %v239
    %v296 = vpack.c.b16 %v244, %v240
    %v297 = vpack.c.b16 %v245, %v241
    %v298 = vpack.c.b16 %v250, %v246
    %v299 = vpack.c.b16 %v251, %v247
    %v300 = vpack.c.b16 %v252, %v248
    %v301 = vpack.c.b16 %v253, %v249
    %v302 = vpack.c.b16 %v258, %v254
    %v303 = vpack.c.b16 %v259, %v255
    %v304 = vpack.c.b16 %v260, %v256
    %v305 = vpack.c.b16 %v261, %v257
    %v306 = vpack.c.b16 %v266, %v262
    %v307 = vpack.c.b16 %v267, %v263
    %v308 = vpack.c.b16 %v268, %v264
    %v309 = vpack.c.b16 %v269, %v265
    %v310 = vpack.c.b16 %v274, %v270
    %v311 = vpack.c.b16 %v275, %v271
    %v312 = vpack.c.b16 %v276, %v272
    %v313 = vpack.c.b16 %v277, %v273
    %v314 = vpack.c.b16 %v282, %v278
    %v315 = vpack.c.b16 %v283, %v279
    %v316 = vpack.c.b16 %v284, %v280
    %v317 = vpack.c.b16 %v285, %v281
    %350 = vmatprep.subr.bf16.mxu0 %v287
    %351 = vmatpush1.bf16.msra.mxu0 %v286
    %352 = vmatprep.subr.bf16.mxu0 %v291
    %353 = vmatpush1.bf16.msra.mxu0 %v290
    %354 = vmatprep.subr.bf16.mxu0 %v295
    %355 = vmatpush1.bf16.msra.mxu0 %v294
    %356 = vmatprep.subr.bf16.mxu0 %v299
    %357 = vmatpush1.bf16.msra.mxu0 %v298
    %358 = vmatprep.subr.bf16.mxu0 %v303
    %359 = vmatpush1.bf16.msra.mxu0 %v302
    %360 = vmatprep.subr.bf16.mxu0 %v307
    %361 = vmatpush1.bf16.msra.mxu0 %v306
    %362 = vmatprep.subr.bf16.mxu0 %v311
    %363 = vmatpush1.bf16.msra.mxu0 %v310
    %364 = vmatprep.subr.bf16.mxu0 %v315
    %365 = vmatpush1.bf16.msra.mxu0 %v314
    %366 = vmatprep.subr.bf16.mxu0 0
    %367 = vmatpush1.bf16.msra.mxu0 0
    %368 = vmatprep.subr.bf16.mxu0 0
    %369 = vmatpush1.bf16.msra.mxu0 0
    %370 = vmatprep.subr.bf16.mxu0 0
    %371 = vmatpush1.bf16.msra.mxu0 0
    %372 = vmatprep.subr.bf16.mxu0 0
    %373 = vmatpush1.bf16.msra.mxu0 0
    %374 = vmatprep.subr.bf16.mxu0 0
    %375 = vmatpush1.bf16.msra.mxu0 0
    %376 = vmatprep.subr.bf16.mxu0 0
    %377 = vmatpush1.bf16.msra.mxu0 0
    %378 = vmatprep.subr.bf16.mxu0 0
    %379 = vmatpush1.bf16.msra.mxu0 0
    %380 = vmatprep.subr.bf16.mxu0 0
    %381 = vmatpush1.bf16.msra.mxu0 0
    %382 = vmatprep.mubr.bf16.mxu0 0
    %383 = vmatmul.mubr.bf16.gmra.mrb[0].mxu0 %v135
    %v384 = vpop.f32.mrb[0].mxu0
    %v385 = vadd.f32 %v173, %v384
    %v386 = vpop.f32.mrb[0].mxu0
    %v387 = vadd.f32 %v177, %v386
    %v388 = vpop.f32.mrb[0].mxu0
    %v389 = vadd.f32 %v173, %v388
    %v390 = vpop.f32.mrb[0].mxu0
    %v391 = vadd.f32 %v177, %v390
    %392 = vdwg.mxu0
    %393 = vmatprep.subr.bf16.mxu0 %v289
    %394 = vmatpush1.bf16.msra.mxu0 %v288
    %395 = vmatprep.subr.bf16.mxu0 %v293
    %396 = vmatpush1.bf16.msra.mxu0 %v292
    %397 = vmatprep.subr.bf16.mxu0 %v297
    %398 = vmatpush1.bf16.msra.mxu0 %v296
    %399 = vmatprep.subr.bf16.mxu0 %v301
    %400 = vmatpush1.bf16.msra.mxu0 %v300
    %401 = vmatprep.subr.bf16.mxu0 %v305
    %402 = vmatpush1.bf16.msra.mxu0 %v304
    %403 = vmatprep.subr.bf16.mxu0 %v309
    %404 = vmatpush1.bf16.msra.mxu0 %v308
    %405 = vmatprep.subr.bf16.mxu0 %v313
    %406 = vmatpush1.bf16.msra.mxu0 %v312
    %407 = vmatprep.subr.bf16.mxu0 %v317
    %408 = vmatpush1.bf16.msra.mxu0 %v316
    %409 = vmatprep.subr.bf16.mxu0 0
    %410 = vmatpush1.bf16.msra.mxu0 0
    %411 = vmatprep.subr.bf16.mxu0 0
    %412 = vmatpush1.bf16.msra.mxu0 0
    %413 = vmatprep.subr.bf16.mxu0 0
    %414 = vmatpush1.bf16.msra.mxu0 0
    %415 = vmatprep.subr.bf16.mxu0 0
    %416 = vmatpush1.bf16.msra.mxu0 0
    %417 = vmatprep.subr.bf16.mxu0 0
    %418 = vmatpush1.bf16.msra.mxu0 0
    %419 = vmatprep.subr.bf16.mxu0 0
    %420 = vmatpush1.bf16.msra.mxu0 0
    %421 = vmatprep.subr.bf16.mxu0 0
    %422 = vmatpush1.bf16.msra.mxu0 0
    %423 = vmatprep.subr.bf16.mxu0 0
    %424 = vmatpush1.bf16.msra.mxu0 0
    %425 = vmatprep.mubr.bf16.mxu0 0
    %426 = vmatmul.mubr.bf16.gmra.mrb[0].mxu0 %v135
    %v427 = vpop.f32.mrb[0].mxu0
    %v428 = vadd.f32 %v181, %v427
    %v429 = vpop.f32.mrb[0].mxu0
    %v430 = vadd.f32 %v185, %v429
    %v431 = vpop.f32.mrb[0].mxu0
    %v432 = vadd.f32 %v181, %v431
    %v433 = vpop.f32.mrb[0].mxu0
    %v434 = vadd.f32 %v185, %v433
    %435 = vdwg.mxu0
    %v436 = vmax.f32 %v385, 0.0
    %v437 = vmax.f32 %v387, 0.0
    %v438 = vmax.f32 %v428, 0.0
    %v439 = vmax.f32 %v430, 0.0
    %v440 = vmax.f32 %v389, 0.0
    %v441 = vmax.f32 %v391, 0.0
    %v442 = vmax.f32 %v432, 0.0
    %v443 = vmax.f32 %v434, 0.0
    %v444 = vpack.c.bf16 %v440, %v436
    %v445 = vpack.c.bf16 %v441, %v437
    %v446 = vpack.c.bf16 %v442, %v438
    %v447 = vpack.c.bf16 %v443, %v439
    %v448 = vld [vmem:[#allocation5] sm:$0xff]
    %v449 = vld [vmem:[#allocation5 + $0x8] sm:$0xff]
    %v450 = vld [vmem:[#allocation5 + $0x10] sm:$0xff]
    %v451 = vld [vmem:[#allocation5 + $0x18] sm:$0xff]
    %v452 = vld [vmem:[#allocation5 + $0x20] sm:$0xff]
    %v453 = vld [vmem:[#allocation5 + $0x28] sm:$0xff]
    %v454 = vld [vmem:[#allocation5 + $0x30] sm:$0xff]
    %v455 = vld [vmem:[#allocation5 + $0x38] sm:$0xff]
    %v456 = vld [vmem:[#allocation5 + $0x40] sm:$0xff]
    %v457 = vld [vmem:[#allocation5 + $0x48] sm:$0xff]
    %v458 = vld [vmem:[#allocation5 + $0x50] sm:$0xff]
    %v459 = vld [vmem:[#allocation5 + $0x58] sm:$0xff]
    %v460 = vld [vmem:[#allocation5 + $0x60] sm:$0xff]
    %v461 = vld [vmem:[#allocation5 + $0x68] sm:$0xff]
    %v462 = vld [vmem:[#allocation5 + $0x70] sm:$0xff]
    %v463 = vld [vmem:[#allocation5 + $0x78] sm:$0xff]
    %v464 = vld [vmem:[#allocation5 + $0x80] sm:$0xff]
    %v465 = vld [vmem:[#allocation5 + $0x88] sm:$0xff]
    %v466 = vld [vmem:[#allocation5 + $0x90] sm:$0xff]
    %v467 = vld [vmem:[#allocation5 + $0x98] sm:$0xff]
    %v468 = vld [vmem:[#allocation5 + $0xa0] sm:$0xff]
    %v469 = vld [vmem:[#allocation5 + $0xa8] sm:$0xff]
    %v470 = vld [vmem:[#allocation5 + $0xb0] sm:$0xff]
    %v471 = vld [vmem:[#allocation5 + $0xb8] sm:$0xff]
    %v472 = vld [vmem:[#allocation5 + $0xc0] sm:$0xff]
    %v473 = vld [vmem:[#allocation5 + $0xc8] sm:$0xff]
    %v474 = vld [vmem:[#allocation5 + $0xd0] sm:$0xff]
    %v475 = vld [vmem:[#allocation5 + $0xd8] sm:$0xff]
    %v476 = vld [vmem:[#allocation5 + $0xe0] sm:$0xff]
    %v477 = vld [vmem:[#allocation5 + $0xe8] sm:$0xff]
    %v478 = vld [vmem:[#allocation5 + $0xf0] sm:$0xff]
    %v479 = vld [vmem:[#allocation5 + $0xf8] sm:$0xff]
    %v480 = vld [vmem:[#allocation5 + $0x100] sm:$0xff]
    %v481 = vld [vmem:[#allocation5 + $0x108] sm:$0xff]
    %v482 = vld [vmem:[#allocation5 + $0x110] sm:$0xff]
    %v483 = vld [vmem:[#allocation5 + $0x118] sm:$0xff]
    %v484 = vld [vmem:[#allocation5 + $0x120] sm:$0xff]
    %v485 = vld [vmem:[#allocation5 + $0x128] sm:$0xff]
    %v486 = vld [vmem:[#allocation5 + $0x130] sm:$0xff]
    %v487 = vld [vmem:[#allocation5 + $0x138] sm:$0xff]
    %v488 = vld [vmem:[#allocation5 + $0x140] sm:$0xff]
    %v489 = vld [vmem:[#allocation5 + $0x148] sm:$0xff]
    %v490 = vld [vmem:[#allocation5 + $0x150] sm:$0xff]
    %v491 = vld [vmem:[#allocation5 + $0x158] sm:$0xff]
    %v492 = vld [vmem:[#allocation5 + $0x160] sm:$0xff]
    %v493 = vld [vmem:[#allocation5 + $0x168] sm:$0xff]
    %v494 = vld [vmem:[#allocation5 + $0x170] sm:$0xff]
    %v495 = vld [vmem:[#allocation5 + $0x178] sm:$0xff]
    %v496 = vld [vmem:[#allocation5 + $0x180] sm:$0xff]
    %v497 = vld [vmem:[#allocation5 + $0x188] sm:$0xff]
    %v498 = vld [vmem:[#allocation5 + $0x190] sm:$0xff]
    %v499 = vld [vmem:[#allocation5 + $0x198] sm:$0xff]
    %v500 = vld [vmem:[#allocation5 + $0x1a0] sm:$0xff]
    %v501 = vld [vmem:[#allocation5 + $0x1a8] sm:$0xff]
    %v502 = vld [vmem:[#allocation5 + $0x1b0] sm:$0xff]
    %v503 = vld [vmem:[#allocation5 + $0x1b8] sm:$0xff]
    %v504 = vld [vmem:[#allocation5 + $0x1c0] sm:$0xff]
    %v505 = vld [vmem:[#allocation5 + $0x1c8] sm:$0xff]
    %v506 = vld [vmem:[#allocation5 + $0x1d0] sm:$0xff]
    %v507 = vld [vmem:[#allocation5 + $0x1d8] sm:$0xff]
    %v508 = vld [vmem:[#allocation5 + $0x1e0] sm:$0xff]
    %v509 = vld [vmem:[#allocation5 + $0x1e8] sm:$0xff]
    %v510 = vld [vmem:[#allocation5 + $0x1f0] sm:$0xff]
    %v511 = vld [vmem:[#allocation5 + $0x1f8] sm:$0xff]
    %v512 = vld [vmem:[%s6] sm:$0x3]
    %v514 = vlaneseq
    %v515 = vshrl.u32 %v514, 7
    %v516 = vsub.s32 0, %v515
    %v517 = vrot.slane %v512, %v516
    %v518 = vlaneseq
    %v519 = vshrl.u32 %v518, 7
    %v520 = vsub.s32 1, %v519
    %v521 = vrot.slane %v512, %v520
    %v588 = vunpack.c.l.b16 %v448
    %v589 = vunpack.c.h.b16 %v448
    %v590 = vunpack.c.l.b16 %v449
    %v591 = vunpack.c.h.b16 %v449
    %v592 = vunpack.c.l.b16 %v450
    %v593 = vunpack.c.h.b16 %v450
    %v594 = vunpack.c.l.b16 %v451
    %v595 = vunpack.c.h.b16 %v451
    %v596 = vunpack.c.l.b16 %v452
    %v597 = vunpack.c.h.b16 %v452
    %v598 = vunpack.c.l.b16 %v453
    %v599 = vunpack.c.h.b16 %v453
    %v600 = vunpack.c.l.b16 %v454
    %v601 = vunpack.c.h.b16 %v454
    %v602 = vunpack.c.l.b16 %v455
    %v603 = vunpack.c.h.b16 %v455
    %v604 = vunpack.c.l.b16 %v456
    %v605 = vunpack.c.h.b16 %v456
    %v606 = vunpack.c.l.b16 %v457
    %v607 = vunpack.c.h.b16 %v457
    %v608 = vunpack.c.l.b16 %v458
    %v609 = vunpack.c.h.b16 %v458
    %v610 = vunpack.c.l.b16 %v459
    %v611 = vunpack.c.h.b16 %v459
    %v612 = vunpack.c.l.b16 %v460
    %v613 = vunpack.c.h.b16 %v460
    %v614 = vunpack.c.l.b16 %v461
    %v615 = vunpack.c.h.b16 %v461
    %v616 = vunpack.c.l.b16 %v462
    %v617 = vunpack.c.h.b16 %v462
    %v618 = vunpack.c.l.b16 %v463
    %v619 = vunpack.c.h.b16 %v463
    %v620 = vunpack.c.l.b16 %v464
    %v621 = vunpack.c.h.b16 %v464
    %v622 = vunpack.c.l.b16 %v465
    %v623 = vunpack.c.h.b16 %v465
    %v624 = vunpack.c.l.b16 %v466
    %v625 = vunpack.c.h.b16 %v466
    %v626 = vunpack.c.l.b16 %v467
    %v627 = vunpack.c.h.b16 %v467
    %v628 = vunpack.c.l.b16 %v468
    %v629 = vunpack.c.h.b16 %v468
    %v630 = vunpack.c.l.b16 %v469
    %v631 = vunpack.c.h.b16 %v469
    %v632 = vunpack.c.l.b16 %v470
    %v633 = vunpack.c.h.b16 %v470
    %v634 = vunpack.c.l.b16 %v471
    %v635 = vunpack.c.h.b16 %v471
    %v636 = vunpack.c.l.b16 %v472
    %v637 = vunpack.c.h.b16 %v472
    %v638 = vunpack.c.l.b16 %v473
    %v639 = vunpack.c.h.b16 %v473
    %v640 = vunpack.c.l.b16 %v474
    %v641 = vunpack.c.h.b16 %v474
    %v642 = vunpack.c.l.b16 %v475
    %v643 = vunpack.c.h.b16 %v475
    %v644 = vunpack.c.l.b16 %v476
    %v645 = vunpack.c.h.b16 %v476
    %v646 = vunpack.c.l.b16 %v477
    %v647 = vunpack.c.h.b16 %v477
    %v648 = vunpack.c.l.b16 %v478
    %v649 = vunpack.c.h.b16 %v478
    %v650 = vunpack.c.l.b16 %v479
    %v651 = vunpack.c.h.b16 %v479
    %v652 = vunpack.c.l.b16 %v480
    %v653 = vunpack.c.h.b16 %v480
    %v654 = vunpack.c.l.b16 %v481
    %v655 = vunpack.c.h.b16 %v481
    %v656 = vunpack.c.l.b16 %v482
    %v657 = vunpack.c.h.b16 %v482
    %v658 = vunpack.c.l.b16 %v483
    %v659 = vunpack.c.h.b16 %v483
    %v660 = vunpack.c.l.b16 %v484
    %v661 = vunpack.c.h.b16 %v484
    %v662 = vunpack.c.l.b16 %v485
    %v663 = vunpack.c.h.b16 %v485
    %v664 = vunpack.c.l.b16 %v486
    %v665 = vunpack.c.h.b16 %v486
    %v666 = vunpack.c.l.b16 %v487
    %v667 = vunpack.c.h.b16 %v487
    %v668 = vunpack.c.l.b16 %v488
    %v669 = vunpack.c.h.b16 %v488
    %v670 = vunpack.c.l.b16 %v489
    %v671 = vunpack.c.h.b16 %v489
    %v672 = vunpack.c.l.b16 %v490
    %v673 = vunpack.c.h.b16 %v490
    %v674 = vunpack.c.l.b16 %v491
    %v675 = vunpack.c.h.b16 %v491
    %v676 = vunpack.c.l.b16 %v492
    %v677 = vunpack.c.h.b16 %v492
    %v678 = vunpack.c.l.b16 %v493
    %v679 = vunpack.c.h.b16 %v493
    %v680 = vunpack.c.l.b16 %v494
    %v681 = vunpack.c.h.b16 %v494
    %v682 = vunpack.c.l.b16 %v495
    %v683 = vunpack.c.h.b16 %v495
    %v684 = vunpack.c.l.b16 %v496
    %v685 = vunpack.c.h.b16 %v496
    %v686 = vunpack.c.l.b16 %v497
    %v687 = vunpack.c.h.b16 %v497
    %v688 = vunpack.c.l.b16 %v498
    %v689 = vunpack.c.h.b16 %v498
    %v690 = vunpack.c.l.b16 %v499
    %v691 = vunpack.c.h.b16 %v499
    %v692 = vunpack.c.l.b16 %v500
    %v693 = vunpack.c.h.b16 %v500
    %v694 = vunpack.c.l.b16 %v501
    %v695 = vunpack.c.h.b16 %v501
    %v696 = vunpack.c.l.b16 %v502
    %v697 = vunpack.c.h.b16 %v502
    %v698 = vunpack.c.l.b16 %v503
    %v699 = vunpack.c.h.b16 %v503
    %v700 = vunpack.c.l.b16 %v504
    %v701 = vunpack.c.h.b16 %v504
    %v702 = vunpack.c.l.b16 %v505
    %v703 = vunpack.c.h.b16 %v505
    %v704 = vunpack.c.l.b16 %v506
    %v705 = vunpack.c.h.b16 %v506
    %v706 = vunpack.c.l.b16 %v507
    %v707 = vunpack.c.h.b16 %v507
    %v708 = vunpack.c.l.b16 %v508
    %v709 = vunpack.c.h.b16 %v508
    %v710 = vunpack.c.l.b16 %v509
    %v711 = vunpack.c.h.b16 %v509
    %v712 = vunpack.c.l.b16 %v510
    %v713 = vunpack.c.h.b16 %v510
    %v714 = vunpack.c.l.b16 %v511
    %v715 = vunpack.c.h.b16 %v511
    %v716 = vpack.c.b16 %v590, %v588
    %v717 = vpack.c.b16 %v591, %v589
    %v718 = vpack.c.b16 %v594, %v592
    %v719 = vpack.c.b16 %v595, %v593
    %v720 = vpack.c.b16 %v598, %v596
    %v721 = vpack.c.b16 %v599, %v597
    %v722 = vpack.c.b16 %v602, %v600
    %v723 = vpack.c.b16 %v603, %v601
    %v724 = vpack.c.b16 %v606, %v604
    %v725 = vpack.c.b16 %v607, %v605
    %v726 = vpack.c.b16 %v610, %v608
    %v727 = vpack.c.b16 %v611, %v609
    %v728 = vpack.c.b16 %v614, %v612
    %v729 = vpack.c.b16 %v615, %v613
    %v730 = vpack.c.b16 %v618, %v616
    %v731 = vpack.c.b16 %v619, %v617
    %v732 = vpack.c.b16 %v622, %v620
    %v733 = vpack.c.b16 %v623, %v621
    %v734 = vpack.c.b16 %v626, %v624
    %v735 = vpack.c.b16 %v627, %v625
    %v736 = vpack.c.b16 %v630, %v628
    %v737 = vpack.c.b16 %v631, %v629
    %v738 = vpack.c.b16 %v634, %v632
    %v739 = vpack.c.b16 %v635, %v633
    %v740 = vpack.c.b16 %v638, %v636
    %v741 = vpack.c.b16 %v639, %v637
    %v742 = vpack.c.b16 %v642, %v640
    %v743 = vpack.c.b16 %v643, %v641
    %v744 = vpack.c.b16 %v646, %v644
    %v745 = vpack.c.b16 %v647, %v645
    %v746 = vpack.c.b16 %v650, %v648
    %v747 = vpack.c.b16 %v651, %v649
    %v748 = vpack.c.b16 %v654, %v652
    %v749 = vpack.c.b16 %v655, %v653
    %v750 = vpack.c.b16 %v658, %v656
    %v751 = vpack.c.b16 %v659, %v657
    %v752 = vpack.c.b16 %v662, %v660
    %v753 = vpack.c.b16 %v663, %v661
    %v754 = vpack.c.b16 %v666, %v664
    %v755 = vpack.c.b16 %v667, %v665
    %v756 = vpack.c.b16 %v670, %v668
    %v757 = vpack.c.b16 %v671, %v669
    %v758 = vpack.c.b16 %v674, %v672
    %v759 = vpack.c.b16 %v675, %v673
    %v760 = vpack.c.b16 %v678, %v676
    %v761 = vpack.c.b16 %v679, %v677
    %v762 = vpack.c.b16 %v682, %v680
    %v763 = vpack.c.b16 %v683, %v681
    %v764 = vpack.c.b16 %v686, %v684
    %v765 = vpack.c.b16 %v687, %v685
    %v766 = vpack.c.b16 %v690, %v688
    %v767 = vpack.c.b16 %v691, %v689
    %v768 = vpack.c.b16 %v694, %v692
    %v769 = vpack.c.b16 %v695, %v693
    %v770 = vpack.c.b16 %v698, %v696
    %v771 = vpack.c.b16 %v699, %v697
    %v772 = vpack.c.b16 %v702, %v700
    %v773 = vpack.c.b16 %v703, %v701
    %v774 = vpack.c.b16 %v706, %v704
    %v775 = vpack.c.b16 %v707, %v705
    %v776 = vpack.c.b16 %v710, %v708
    %v777 = vpack.c.b16 %v711, %v709
    %v778 = vpack.c.b16 %v714, %v712
    %v779 = vpack.c.b16 %v715, %v713
    %844 = vmatprep.subr.bf16.mxu0 %v717
    %845 = vmatpush1.bf16.msra.mxu0 %v716
    %846 = vmatprep.subr.bf16.mxu0 %v719
    %847 = vmatpush1.bf16.msra.mxu0 %v718
    %848 = vmatprep.subr.bf16.mxu0 %v721
    %849 = vmatpush1.bf16.msra.mxu0 %v720
    %850 = vmatprep.subr.bf16.mxu0 %v723
    %851 = vmatpush1.bf16.msra.mxu0 %v722
    %852 = vmatprep.subr.bf16.mxu0 %v725
    %853 = vmatpush1.bf16.msra.mxu0 %v724
    %854 = vmatprep.subr.bf16.mxu0 %v727
    %855 = vmatpush1.bf16.msra.mxu0 %v726
    %856 = vmatprep.subr.bf16.mxu0 %v729
    %857 = vmatpush1.bf16.msra.mxu0 %v728
    %858 = vmatprep.subr.bf16.mxu0 %v731
    %859 = vmatpush1.bf16.msra.mxu0 %v730
    %860 = vmatprep.subr.bf16.mxu0 %v733
    %861 = vmatpush1.bf16.msra.mxu0 %v732
    %862 = vmatprep.subr.bf16.mxu0 %v735
    %863 = vmatpush1.bf16.msra.mxu0 %v734
    %864 = vmatprep.subr.bf16.mxu0 %v737
    %865 = vmatpush1.bf16.msra.mxu0 %v736
    %866 = vmatprep.subr.bf16.mxu0 %v739
    %867 = vmatpush1.bf16.msra.mxu0 %v738
    %868 = vmatprep.subr.bf16.mxu0 %v741
    %869 = vmatpush1.bf16.msra.mxu0 %v740
    %870 = vmatprep.subr.bf16.mxu0 %v743
    %871 = vmatpush1.bf16.msra.mxu0 %v742
    %872 = vmatprep.subr.bf16.mxu0 %v745
    %873 = vmatpush1.bf16.msra.mxu0 %v744
    %874 = vmatprep.subr.bf16.mxu0 %v747
    %875 = vmatpush1.bf16.msra.mxu0 %v746
    %876 = vmatprep.mubr.bf16.mxu0 %v445
    %877 = vmatmul.mubr.bf16.gmra.mrb[0].mxu0 %v444
    %v878 = vpop.f32.mrb[0].mxu0
    %v879 = vadd.f32 %v517, %v878
    %v880 = vpop.f32.mrb[0].mxu0
    %v881 = vadd.f32 %v521, %v880
    %v882 = vpop.f32.mrb[0].mxu0
    %v883 = vadd.f32 %v517, %v882
    %v884 = vpop.f32.mrb[0].mxu0
    %v885 = vadd.f32 %v521, %v884
    %886 = vdwg.mxu0
    %887 = vmatprep.subr.bf16.mxu0 %v749
    %888 = vmatpush1.bf16.msra.mxu0 %v748
    %889 = vmatprep.subr.bf16.mxu0 %v751
    %890 = vmatpush1.bf16.msra.mxu0 %v750
    %891 = vmatprep.subr.bf16.mxu0 %v753
    %892 = vmatpush1.bf16.msra.mxu0 %v752
    %893 = vmatprep.subr.bf16.mxu0 %v755
    %894 = vmatpush1.bf16.msra.mxu0 %v754
    %895 = vmatprep.subr.bf16.mxu0 %v757
    %896 = vmatpush1.bf16.msra.mxu0 %v756
    %897 = vmatprep.subr.bf16.mxu0 %v759
    %898 = vmatpush1.bf16.msra.mxu0 %v758
    %899 = vmatprep.subr.bf16.mxu0 %v761
    %900 = vmatpush1.bf16.msra.mxu0 %v760
    %901 = vmatprep.subr.bf16.mxu0 %v763
    %902 = vmatpush1.bf16.msra.mxu0 %v762
    %903 = vmatprep.subr.bf16.mxu0 %v765
    %904 = vmatpush1.bf16.msra.mxu0 %v764
    %905 = vmatprep.subr.bf16.mxu0 %v767
    %906 = vmatpush1.bf16.msra.mxu0 %v766
    %907 = vmatprep.subr.bf16.mxu0 %v769
    %908 = vmatpush1.bf16.msra.mxu0 %v768
    %909 = vmatprep.subr.bf16.mxu0 %v771
    %910 = vmatpush1.bf16.msra.mxu0 %v770
    %911 = vmatprep.subr.bf16.mxu0 %v773
    %912 = vmatpush1.bf16.msra.mxu0 %v772
    %913 = vmatprep.subr.bf16.mxu0 %v775
    %914 = vmatpush1.bf16.msra.mxu0 %v774
    %915 = vmatprep.subr.bf16.mxu0 %v777
    %916 = vmatpush1.bf16.msra.mxu0 %v776
    %917 = vmatprep.subr.bf16.mxu0 %v779
    %918 = vmatpush1.bf16.msra.mxu0 %v778
    %919 = vmatprep.mubr.bf16.mxu0 %v447
    %920 = vmatmul.mubr.bf16.gmra.mrb[0].mxu0 %v446
    %v921 = vpop.f32.mrb[0].mxu0
    %v922 = vadd.f32 %v879, %v921
    %v923 = vpop.f32.mrb[0].mxu0
    %v924 = vadd.f32 %v881, %v923
    %v925 = vpop.f32.mrb[0].mxu0
    %v926 = vadd.f32 %v883, %v925
    %v927 = vpop.f32.mrb[0].mxu0
    %v928 = vadd.f32 %v885, %v927
    %929 = vdwg.mxu0
    %v930 = vmax.f32 %v922, 0.0
    %v931 = vmax.f32 %v924, 0.0
    %v932 = vmax.f32 %v926, 0.0
    %v933 = vmax.f32 %v928, 0.0
    %v934 = vpack.c.bf16 %v932, %v930
    %v935 = vpack.c.bf16 %v933, %v931
    %v936 = vld [vmem:[%s7] sm:$0xf]
    %v937 = vld [vmem:[%s7 + $0x4] sm:$0xf]
    %v938 = vld [vmem:[%s7 + $0x8] sm:$0xf]
    %v939 = vld [vmem:[%s7 + $0xc] sm:$0xf]
    %v940 = vld [vmem:[%s7 + $0x10] sm:$0xf]
    %v941 = vld [vmem:[%s7 + $0x14] sm:$0xf]
    %v942 = vld [vmem:[%s7 + $0x18] sm:$0xf]
    %v943 = vld [vmem:[%s7 + $0x1c] sm:$0xf]
    %v944 = vld [vmem:[%s7 + $0x20] sm:$0xf]
    %v945 = vld [vmem:[%s7 + $0x24] sm:$0xf]
    %v946 = vld [vmem:[%s7 + $0x28] sm:$0xf]
    %v947 = vld [vmem:[%s7 + $0x2c] sm:$0xf]
    %v948 = vld [vmem:[%s7 + $0x30] sm:$0xf]
    %v949 = vld [vmem:[%s7 + $0x34] sm:$0xf]
    %v950 = vld [vmem:[%s7 + $0x38] sm:$0xf]
    %v951 = vld [vmem:[%s7 + $0x3c] sm:$0xf]
    %v952 = vld [vmem:[%s7 + $0x40] sm:$0xf]
    %v953 = vld [vmem:[%s7 + $0x44] sm:$0xf]
    %v954 = vld [vmem:[%s7 + $0x48] sm:$0xf]
    %v955 = vld [vmem:[%s7 + $0x4c] sm:$0xf]
    %v956 = vld [vmem:[%s7 + $0x50] sm:$0xf]
    %v957 = vld [vmem:[%s7 + $0x54] sm:$0xf]
    %v958 = vld [vmem:[%s7 + $0x58] sm:$0xf]
    %v959 = vld [vmem:[%s7 + $0x5c] sm:$0xf]
    %v960 = vld [vmem:[%s7 + $0x60] sm:$0xf]
    %v961 = vld [vmem:[%s7 + $0x64] sm:$0xf]
    %v962 = vld [vmem:[%s7 + $0x68] sm:$0xf]
    %v963 = vld [vmem:[%s7 + $0x6c] sm:$0xf]
    %v964 = vld [vmem:[%s7 + $0x70] sm:$0xf]
    %v965 = vld [vmem:[%s7 + $0x74] sm:$0xf]
    %v966 = vld [vmem:[%s7 + $0x78] sm:$0xf]
    %v967 = vld [vmem:[%s7 + $0x7c] sm:$0xf]
    %v968 = vld [vmem:[%s8] sm:$0x1]
    %v970 = vlaneseq
    %v971 = vshrl.u32 %v970, 7
    %v972 = vsub.s32 0, %v971
    %v973 = vrot.slane %v968, %v972
    %v1007 = vunpack.c.l.b16 %v936
    %v1008 = vunpack.c.l.b16 %v937
    %v1009 = vunpack.c.l.b16 %v938
    %v1010 = vunpack.c.l.b16 %v939
    %v1011 = vunpack.c.l.b16 %v940
    %v1012 = vunpack.c.l.b16 %v941
    %v1013 = vunpack.c.l.b16 %v942
    %v1014 = vunpack.c.l.b16 %v943
    %v1015 = vunpack.c.l.b16 %v944
    %v1016 = vunpack.c.l.b16 %v945
    %v1017 = vunpack.c.l.b16 %v946
    %v1018 = vunpack.c.l.b16 %v947
    %v1019 = vunpack.c.l.b16 %v948
    %v1020 = vunpack.c.l.b16 %v949
    %v1021 = vunpack.c.l.b16 %v950
    %v1022 = vunpack.c.l.b16 %v951
    %v1023 = vunpack.c.l.b16 %v952
    %v1024 = vunpack.c.l.b16 %v953
    %v1025 = vunpack.c.l.b16 %v954
    %v1026 = vunpack.c.l.b16 %v955
    %v1027 = vunpack.c.l.b16 %v956
    %v1028 = vunpack.c.l.b16 %v957
    %v1029 = vunpack.c.l.b16 %v958
    %v1030 = vunpack.c.l.b16 %v959
    %v1031 = vunpack.c.l.b16 %v960
    %v1032 = vunpack.c.l.b16 %v961
    %v1033 = vunpack.c.l.b16 %v962
    %v1034 = vunpack.c.l.b16 %v963
    %v1035 = vunpack.c.l.b16 %v964
    %v1036 = vunpack.c.l.b16 %v965
    %v1037 = vunpack.c.l.b16 %v966
    %v1038 = vunpack.c.l.b16 %v967
    %v1039 = vpack.c.b16 %v1008, %v1007
    %v1040 = vpack.c.b16 %v1010, %v1009
    %v1041 = vpack.c.b16 %v1012, %v1011
    %v1042 = vpack.c.b16 %v1014, %v1013
    %v1043 = vpack.c.b16 %v1016, %v1015
    %v1044 = vpack.c.b16 %v1018, %v1017
    %v1045 = vpack.c.b16 %v1020, %v1019
    %v1046 = vpack.c.b16 %v1022, %v1021
    %v1047 = vpack.c.b16 %v1024, %v1023
    %v1048 = vpack.c.b16 %v1026, %v1025
    %v1049 = vpack.c.b16 %v1028, %v1027
    %v1050 = vpack.c.b16 %v1030, %v1029
    %v1051 = vpack.c.b16 %v1032, %v1031
    %v1052 = vpack.c.b16 %v1034, %v1033
    %v1053 = vpack.c.b16 %v1036, %v1035
    %v1054 = vpack.c.b16 %v1038, %v1037
    %1071 = vmatprep.subr.bf16.mxu0 0
    %1072 = vmatpush1.bf16.msra.mxu0 %v1039
    %1073 = vmatprep.subr.bf16.mxu0 0
    %1074 = vmatpush1.bf16.msra.mxu0 %v1040
    %1075 = vmatprep.subr.bf16.mxu0 0
    %1076 = vmatpush1.bf16.msra.mxu0 %v1041
    %1077 = vmatprep.subr.bf16.mxu0 0
    %1078 = vmatpush1.bf16.msra.mxu0 %v1042
    %1079 = vmatprep.subr.bf16.mxu0 0
    %1080 = vmatpush1.bf16.msra.mxu0 %v1043
    %1081 = vmatprep.subr.bf16.mxu0 0
    %1082 = vmatpush1.bf16.msra.mxu0 %v1044
    %1083 = vmatprep.subr.bf16.mxu0 0
    %1084 = vmatpush1.bf16.msra.mxu0 %v1045
    %1085 = vmatprep.subr.bf16.mxu0 0
    %1086 = vmatpush1.bf16.msra.mxu0 %v1046
    %1087 = vmatprep.subr.bf16.mxu0 0
    %1088 = vmatpush1.bf16.msra.mxu0 %v1047
    %1089 = vmatprep.subr.bf16.mxu0 0
    %1090 = vmatpush1.bf16.msra.mxu0 %v1048
    %1091 = vmatprep.subr.bf16.mxu0 0
    %1092 = vmatpush1.bf16.msra.mxu0 %v1049
    %1093 = vmatprep.subr.bf16.mxu0 0
    %1094 = vmatpush1.bf16.msra.mxu0 %v1050
    %1095 = vmatprep.subr.bf16.mxu0 0
    %1096 = vmatpush1.bf16.msra.mxu0 %v1051
    %1097 = vmatprep.subr.bf16.mxu0 0
    %1098 = vmatpush1.bf16.msra.mxu0 %v1052
    %1099 = vmatprep.subr.bf16.mxu0 0
    %1100 = vmatpush1.bf16.msra.mxu0 %v1053
    %1101 = vmatprep.subr.bf16.mxu0 0
    %1102 = vmatpush1.bf16.msra.mxu0 %v1054
    %1103 = vmatprep.mubr.bf16.mxu0 %v935
    %1104 = vmatmul.mubr.bf16.gmra.mrb[0].mxu0 %v934
    %v1105 = vpop.f32.mrb[0].mxu0
    %v1106 = vadd.f32 %v973, %v1105
    %v1107 = vpop.f32.mrb[0].mxu0
    %v1108 = vpop.f32.mrb[0].mxu0
    %v1109 = vadd.f32 %v973, %v1108
    %v1110 = vpop.f32.mrb[0].mxu0
    %1111 = vdwg.mxu0
    %vm1112 = vcmask 130048
    %1113 = vst.msk [vmem:[#allocation7] sm:$0xff] %vm1112, %v1106
    %1114 = vst.msk [vmem:[#allocation7 + $0x8] sm:$0xff] %vm1112, %v1109
    // Predicated region
    $region46: #{tpu_custom_call.1} parent=1 // pred_check
      _
    $region47: #{tpu_custom_call.1} parent=1 // pred_check_branch
      %1116 = sbr.rel (0) target = $region49
    $region48: #{tpu_custom_call.1} parent=1 // pred_region
      %s1118 = ssub.s32 256, 256
      %1119 = vsyncadd [#allocation4], %s1118
      %s1120 = sshll.u32 [#allocation7], 4
      %s1121 = int_to_ptr.vmem [resolvable:$true] %s1120
      %1126 = dma.vmem_to_hbm [thread:$0]  %s1121, 256, %s9, [#allocation4], 128, 128, 8
    $region49: #{tpu_custom_call.1} parent=1 // pred_fallthru
      _
    // Predicated region
    $region50: #{tpu_custom_call.1} parent=1 // pred_check
      _
    $region51: #{tpu_custom_call.1} parent=1 // pred_check_branch
      %1128 = sbr.rel (0) target = $region53
    $region52: #{tpu_custom_call.1} parent=1 // pred_region
      %1129 = dma.done [#allocation4], 256
    $region53: #{tpu_custom_call.1} parent=1 // pred_fallthru
      _
    %1130 = vsyncpa [#allocation3], 1
    %1131 = vsyncpa [#allocation6], 1
    %1132 = vsyncpa [#allocation4], 1

// kernel: tpu_custom_call.1
$region0: #{tpu_custom_call.1}
  #allocation0 [shape = 'u32[]', space=smem, size = 0x4, offset = 0x4, fixed_abs, tag = 'smem constant byte address 0x4 - core index']
  #allocation1 [shape = 'u32[144,128]{1,0:T(1,128)}', space=vmem, size = 0x12000, scoped, tag = 'internal scratch']
  %s0 = inlined_call_operand.vmem [shape: f32[16,32], index: 0, kind: input, shape index: {}]
  %s1 = inlined_call_operand.vmem [shape: bf16[32,128], index: 1, kind: input, shape index: {}]
  %s2 = inlined_call_operand.vmem [shape: f32[1,128], index: 2, kind: input, shape index: {}]
  %s3 = inlined_call_operand.hbm [shape: bf16[128,512], index: 3, kind: input, shape index: {}]
  %s4 = inlined_call_operand.vmem [shape: f32[1,512], index: 4, kind: input, shape index: {}]
  %s5 = inlined_call_operand.hbm [shape: bf16[512,256], index: 5, kind: input, shape index: {}]
  %s6 = inlined_call_operand.vmem [shape: f32[1,256], index: 6, kind: input, shape index: {}]
  %s7 = inlined_call_operand.vmem [shape: bf16[256,16], index: 7, kind: input, shape index: {}]
  %s8 = inlined_call_operand.vmem [shape: f32[1,16], index: 8, kind: input, shape index: {}]
  %s9 = inlined_call_operand.hbm [shape: f32[16,16], index: 9, kind: output, shape index: {}]
  %s10 = sld [smem:[#allocation0]]
  $region54: #{tpu_custom_call.1} parent=0
    _
  %s12 = ssub.s32 1, %s10
  %s13 = scalar_select 0, %s12, %s10
  $region1: #{tpu_custom_call.1} parent=0
    #allocation2 [shape = 'u8[131072]{0}', space=vmem, size = 0x20000, scoped, tag = 'input window, operand 3, single buffered']
    #allocation3 [shape = 's32[1]{0}', space=sflag, size = 0x4, scoped, tag = 'scoped memory for tpu_custom_call.1']
    #allocation4 [shape = 's32[1]{0}', space=sflag, size = 0x4, scoped, tag = 'scoped memory for tpu_custom_call.1']
    #allocation5 [shape = 'u8[262144]{0}', space=vmem, size = 0x40000, scoped, tag = 'input window, operand 5, single buffered']
    #allocation6 [shape = 's32[1]{0}', space=sflag, size = 0x4, scoped, tag = 'scoped memory for tpu_custom_call.1']
    #allocation7 [shape = 'u8[8192]{0}', space=vmem, size = 0x2000, scoped, tag = 'output window, operand 0, single buffered']
    %14 = vsyncpa [#allocation3], 0
    %15 = vsyncpa [#allocation6], 0
    %16 = vsyncpa [#allocation4], 0
    // Predicated region
    $region2: #{tpu_custom_call.1} parent=1 // pred_check
      _
    $region3: #{tpu_custom_call.1} parent=1 // pred_check_branch
      %18 = sbr.rel (0) target = $region5
    $region4: #{tpu_custom_call.1} parent=1 // pred_region
      _
    $region5: #{tpu_custom_call.1} parent=1 // pred_fallthru
      _
    // Predicated region
    $region6: #{tpu_custom_call.1} parent=1 // pred_check
      _
    $region7: #{tpu_custom_call.1} parent=1 // pred_check_branch
      %20 = sbr.rel (0) target = $region9
    $region8: #{tpu_custom_call.1} parent=1 // pred_region
      _
    $region9: #{tpu_custom_call.1} parent=1 // pred_fallthru
      _
    // Predicated region
    $region10: #{tpu_custom_call.1} parent=1 // pred_check
      _
    $region11: #{tpu_custom_call.1} parent=1 // pred_check_branch
      %22 = sbr.rel (0) target = $region13
    $region12: #{tpu_custom_call.1} parent=1 // pred_region
      _
    $region13: #{tpu_custom_call.1} parent=1 // pred_fallthru
      _
    // Predicated region
    $region14: #{tpu_custom_call.1} parent=1 // pred_check
      _
    $region15: #{tpu_custom_call.1} parent=1 // pred_check_branch
      %24 = sbr.rel (0) target = $region17
    $region16: #{tpu_custom_call.1} parent=1 // pred_region
      %s26 = ssub.s32 4096, 4096
      %27 = vsyncadd [#allocation3], %s26
      %s28 = sshll.u32 [#allocation2], 4
      %s29 = int_to_ptr.vmem [resolvable:$true] %s28
      %34 = dma.hbm_to_vmem [thread:$0]  %s3, 4096, %s29, [#allocation3], 256, 256, 16
    $region17: #{tpu_custom_call.1} parent=1 // pred_fallthru
      _
    // Predicated region
    $region18: #{tpu_custom_call.1} parent=1 // pred_check
      _
    $region19: #{tpu_custom_call.1} parent=1 // pred_check_branch
      %36 = sbr.rel (0) target = $region21
    $region20: #{tpu_custom_call.1} parent=1 // pred_region
      _
    $region21: #{tpu_custom_call.1} parent=1 // pred_fallthru
      _
    // Predicated region
    $region22: #{tpu_custom_call.1} parent=1 // pred_check
      _
    $region23: #{tpu_custom_call.1} parent=1 // pred_check_branch
      %38 = sbr.rel (0) target = $region25
    $region24: #{tpu_custom_call.1} parent=1 // pred_region
      %s40 = ssub.s32 8192, 8192
      %41 = vsyncadd [#allocation6], %s40
      %s42 = sshll.u32 [#allocation5], 4
      %s43 = int_to_ptr.vmem [resolvable:$true] %s42
      %48 = dma.hbm_to_vmem [thread:$0]  %s5, 8192, %s43, [#allocation6], 128, 128, 8
    $region25: #{tpu_custom_call.1} parent=1 // pred_fallthru
      _
    // Predicated region
    $region26: #{tpu_custom_call.1} parent=1 // pred_check
      _
    $region27: #{tpu_custom_call.1} parent=1 // pred_check_branch
      %50 = sbr.rel (0) target = $region29
    $region28: #{tpu_custom_call.1} parent=1 // pred_region
      _
    $region29: #{tpu_custom_call.1} parent=1 // pred_fallthru
      _
    // Predicated region
    $region30: #{tpu_custom_call.1} parent=1 // pred_check
      _
    $region31: #{tpu_custom_call.1} parent=1 // pred_check_branch
      %52 = sbr.rel (0) target = $region33
    $region32: #{tpu_custom_call.1} parent=1 // pred_region
      _
    $region33: #{tpu_custom_call.1} parent=1 // pred_fallthru
      _
    // Predicated region
    $region34: #{tpu_custom_call.1} parent=1 // pred_check
      _
    $region35: #{tpu_custom_call.1} parent=1 // pred_check_branch
      %54 = sbr.rel (0) target = $region37
    $region36: #{tpu_custom_call.1} parent=1 // pred_region
      _
    $region37: #{tpu_custom_call.1} parent=1 // pred_fallthru
      _
    // Predicated region
    $region38: #{tpu_custom_call.1} parent=1 // pred_check
      _
    $region39: #{tpu_custom_call.1} parent=1 // pred_check_branch
      %56 = sbr.rel (0) target = $region41
    $region40: #{tpu_custom_call.1} parent=1 // pred_region
      %57 = dma.done [#allocation3], 4096
    $region41: #{tpu_custom_call.1} parent=1 // pred_fallthru
      _
    // Predicated region
    $region42: #{tpu_custom_call.1} parent=1 // pred_check
      _
    $region43: #{tpu_custom_call.1} parent=1 // pred_check_branch
      %59 = sbr.rel (0) target = $region45
    $region44: #{tpu_custom_call.1} parent=1 // pred_region
      %60 = dma.done [#allocation6], 8192
    $region45: #{tpu_custom_call.1} parent=1 // pred_fallthru
      _
    %v62 = vld [vmem:[%s0] sm:$0xff]
    %v63 = vld [vmem:[%s0 + $0x8] sm:$0xff]
    %v64 = vpack.c.bf16 %v63, %v62
    %v65 = vld [vmem:[%s1] sm:$0xf]
    %v66 = vld [vmem:[%s1 + $0x4] sm:$0xf]
    %v67 = vld [vmem:[%s1 + $0x8] sm:$0xf]
    %v68 = vld [vmem:[%s1 + $0xc] sm:$0xf]
    %v69 = vld [vmem:[%s2] sm:$0x1]
    %v71 = vlaneseq
    %v72 = vshrl.u32 %v71, 7
    %v73 = vsub.s32 0, %v72
    %v74 = vrot.slane %v69, %v73
    %v80 = vunpack.c.l.b16 %v65
    %v81 = vunpack.c.l.b16 %v66
    %v82 = vunpack.c.l.b16 %v67
    %v83 = vunpack.c.l.b16 %v68
    %v84 = vpack.c.b16 %v81, %v80
    %v85 = vpack.c.b16 %v83, %v82
    %vm88 = vcmask 261120
    %v90 = vsel %vm88, %v64, 0
    %92 = vmatprep.subr.bf16.mxu0 0
    %93 = vmatpush1.bf16.msra.mxu0 %v84
    %94 = vmatprep.subr.bf16.mxu0 0
    %95 = vmatpush1.bf16.msra.mxu0 %v85
    %96 = vmatprep.subr.bf16.mxu0 0
    %97 = vmatpush1.bf16.msra.mxu0 0
    %98 = vmatprep.subr.bf16.mxu0 0
    %99 = vmatpush1.bf16.msra.mxu0 0
    %100 = vmatprep.subr.bf16.mxu0 0
    %101 = vmatpush1.bf16.msra.mxu0 0
    %102 = vmatprep.subr.bf16.mxu0 0
    %103 = vmatpush1.bf16.msra.mxu0 0
    %104 = vmatprep.subr.bf16.mxu0 0
    %105 = vmatpush1.bf16.msra.mxu0 0
    %106 = vmatprep.subr.bf16.mxu0 0
    %107 = vmatpush1.bf16.msra.mxu0 0
    %108 = vmatprep.subr.bf16.mxu0 0
    %109 = vmatpush1.bf16.msra.mxu0 0
    %110 = vmatprep.subr.bf16.mxu0 0
    %111 = vmatpush1.bf16.msra.mxu0 0
    %112 = vmatprep.subr.bf16.mxu0 0
    %113 = vmatpush1.bf16.msra.mxu0 0
    %114 = vmatprep.subr.bf16.mxu0 0
    %115 = vmatpush1.bf16.msra.mxu0 0
    %116 = vmatprep.subr.bf16.mxu0 0
    %117 = vmatpush1.bf16.msra.mxu0 0
    %118 = vmatprep.subr.bf16.mxu0 0
    %119 = vmatpush1.bf16.msra.mxu0 0
    %120 = vmatprep.subr.bf16.mxu0 0
    %121 = vmatpush1.bf16.msra.mxu0 0
    %122 = vmatprep.subr.bf16.mxu0 0
    %123 = vmatpush1.bf16.msra.mxu0 0
    %124 = vmatprep.mubr.bf16.mxu0 0
    %125 = vmatmul.mubr.bf16.gmra.mrb[0].mxu0 %v90
    %v126 = vpop.f32.mrb[0].mxu0
    %v127 = vadd.f32 %v74, %v126
    %v128 = vpop.f32.mrb[0].mxu0
    %v129 = vpop.f32.mrb[0].mxu0
    %v130 = vadd.f32 %v74, %v129
    %v131 = vpop.f32.mrb[0].mxu0
    %132 = vdwg.mxu0
    %v133 = vmax.f32 %v127, 0.0
    %v134 = vmax.f32 %v130, 0.0
    %v135 = vpack.c.bf16 %v134, %v133
    %v136 = vld [vmem:[#allocation2] sm:$0xff]
    %v137 = vld [vmem:[#allocation2 + $0x8] sm:$0xff]
    %v138 = vld [vmem:[#allocation2 + $0x10] sm:$0xff]
    %v139 = vld [vmem:[#allocation2 + $0x18] sm:$0xff]
    %v140 = vld [vmem:[#allocation2 + $0x20] sm:$0xff]
    %v141 = vld [vmem:[#allocation2 + $0x28] sm:$0xff]
    %v142 = vld [vmem:[#allocation2 + $0x30] sm:$0xff]
    %v143 = vld [vmem:[#allocation2 + $0x38] sm:$0xff]
    %v144 = vld [vmem:[#allocation2 + $0x40] sm:$0xff]
    %v145 = vld [vmem:[#allocation2 + $0x48] sm:$0xff]
    %v146 = vld [vmem:[#allocation2 + $0x50] sm:$0xff]
    %v147 = vld [vmem:[#allocation2 + $0x58] sm:$0xff]
    %v148 = vld [vmem:[#allocation2 + $0x60] sm:$0xff]
    %v149 = vld [vmem:[#allocation2 + $0x68] sm:$0xff]
    %v150 = vld [vmem:[#allocation2 + $0x70] sm:$0xff]
    %v151 = vld [vmem:[#allocation2 + $0x78] sm:$0xff]
    %v152 = vld [vmem:[#allocation2 + $0x80] sm:$0xff]
    %v153 = vld [vmem:[#allocation2 + $0x88] sm:$0xff]
    %v154 = vld [vmem:[#allocation2 + $0x90] sm:$0xff]
    %v155 = vld [vmem:[#allocation2 + $0x98] sm:$0xff]
    %v156 = vld [vmem:[#allocation2 + $0xa0] sm:$0xff]
    %v157 = vld [vmem:[#allocation2 + $0xa8] sm:$0xff]
    %v158 = vld [vmem:[#allocation2 + $0xb0] sm:$0xff]
    %v159 = vld [vmem:[#allocation2 + $0xb8] sm:$0xff]
    %v160 = vld [vmem:[#allocation2 + $0xc0] sm:$0xff]
    %v161 = vld [vmem:[#allocation2 + $0xc8] sm:$0xff]
    %v162 = vld [vmem:[#allocation2 + $0xd0] sm:$0xff]
    %v163 = vld [vmem:[#allocation2 + $0xd8] sm:$0xff]
    %v164 = vld [vmem:[#allocation2 + $0xe0] sm:$0xff]
    %v165 = vld [vmem:[#allocation2 + $0xe8] sm:$0xff]
    %v166 = vld [vmem:[#allocation2 + $0xf0] sm:$0xff]
    %v167 = vld [vmem:[#allocation2 + $0xf8] sm:$0xff]
    %v168 = vld [vmem:[%s4] sm:$0xf]
    %v170 = vlaneseq
    %v171 = vshrl.u32 %v170, 7
    %v172 = vsub.s32 0, %v171
    %v173 = vrot.slane %v168, %v172
    %v174 = vlaneseq
    %v175 = vshrl.u32 %v174, 7
    %v176 = vsub.s32 1, %v175
    %v177 = vrot.slane %v168, %v176
    %v178 = vlaneseq
    %v179 = vshrl.u32 %v178, 7
    %v180 = vsub.s32 2, %v179
    %v181 = vrot.slane %v168, %v180
    %v182 = vlaneseq
    %v183 = vshrl.u32 %v182, 7
    %v184 = vsub.s32 3, %v183
    %v185 = vrot.slane %v168, %v184
    %v222 = vunpack.c.l.b16 %v136
    %v223 = vunpack.c.h.b16 %v136
    %v224 = vunpack.c.l.b16 %v137
    %v225 = vunpack.c.h.b16 %v137
    %v226 = vunpack.c.l.b16 %v138
    %v227 = vunpack.c.h.b16 %v138
    %v228 = vunpack.c.l.b16 %v139
    %v229 = vunpack.c.h.b16 %v139
    %v230 = vunpack.c.l.b16 %v140
    %v231 = vunpack.c.h.b16 %v140
    %v232 = vunpack.c.l.b16 %v141
    %v233 = vunpack.c.h.b16 %v141
    %v234 = vunpack.c.l.b16 %v142
    %v235 = vunpack.c.h.b16 %v142
    %v236 = vunpack.c.l.b16 %v143
    %v237 = vunpack.c.h.b16 %v143
    %v238 = vunpack.c.l.b16 %v144
    %v239 = vunpack.c.h.b16 %v144
    %v240 = vunpack.c.l.b16 %v145
    %v241 = vunpack.c.h.b16 %v145
    %v242 = vunpack.c.l.b16 %v146
    %v243 = vunpack.c.h.b16 %v146
    %v244 = vunpack.c.l.b16 %v147
    %v245 = vunpack.c.h.b16 %v147
    %v246 = vunpack.c.l.b16 %v148
    %v247 = vunpack.c.h.b16 %v148
    %v248 = vunpack.c.l.b16 %v149
    %v249 = vunpack.c.h.b16 %v149
    %v250 = vunpack.c.l.b16 %v150
    %v251 = vunpack.c.h.b16 %v150
    %v252 = vunpack.c.l.b16 %v151
    %v253 = vunpack.c.h.b16 %v151
    %v254 = vunpack.c.l.b16 %v152
    %v255 = vunpack.c.h.b16 %v152
    %v256 = vunpack.c.l.b16 %v153
    %v257 = vunpack.c.h.b16 %v153
    %v258 = vunpack.c.l.b16 %v154
    %v259 = vunpack.c.h.b16 %v154
    %v260 = vunpack.c.l.b16 %v155
    %v261 = vunpack.c.h.b16 %v155
    %v262 = vunpack.c.l.b16 %v156
    %v263 = vunpack.c.h.b16 %v156
    %v264 = vunpack.c.l.b16 %v157
    %v265 = vunpack.c.h.b16 %v157
    %v266 = vunpack.c.l.b16 %v158
    %v267 = vunpack.c.h.b16 %v158
    %v268 = vunpack.c.l.b16 %v159
    %v269 = vunpack.c.h.b16 %v159
    %v270 = vunpack.c.l.b16 %v160
    %v271 = vunpack.c.h.b16 %v160
    %v272 = vunpack.c.l.b16 %v161
    %v273 = vunpack.c.h.b16 %v161
    %v274 = vunpack.c.l.b16 %v162
    %v275 = vunpack.c.h.b16 %v162
    %v276 = vunpack.c.l.b16 %v163
    %v277 = vunpack.c.h.b16 %v163
    %v278 = vunpack.c.l.b16 %v164
    %v279 = vunpack.c.h.b16 %v164
    %v280 = vunpack.c.l.b16 %v165
    %v281 = vunpack.c.h.b16 %v165
    %v282 = vunpack.c.l.b16 %v166
    %v283 = vunpack.c.h.b16 %v166
    %v284 = vunpack.c.l.b16 %v167
    %v285 = vunpack.c.h.b16 %v167
    %v286 = vpack.c.b16 %v226, %v222
    %v287 = vpack.c.b16 %v227, %v223
    %v288 = vpack.c.b16 %v228, %v224
    %v289 = vpack.c.b16 %v229, %v225
    %v290 = vpack.c.b16 %v234, %v230
    %v291 = vpack.c.b16 %v235, %v231
    %v292 = vpack.c.b16 %v236, %v232
    %v293 = vpack.c.b16 %v237, %v233
    %v294 = vpack.c.b16 %v242, %v238
    %v295 = vpack.c.b16 %v243, %v239
    %v296 = vpack.c.b16 %v244, %v240
    %v297 = vpack.c.b16 %v245, %v241
    %v298 = vpack.c.b16 %v250, %v246
    %v299 = vpack.c.b16 %v251, %v247
    %v300 = vpack.c.b16 %v252, %v248
    %v301 = vpack.c.b16 %v253, %v249
    %v302 = vpack.c.b16 %v258, %v254
    %v303 = vpack.c.b16 %v259, %v255
    %v304 = vpack.c.b16 %v260, %v256
    %v305 = vpack.c.b16 %v261, %v257
    %v306 = vpack.c.b16 %v266, %v262
    %v307 = vpack.c.b16 %v267, %v263
    %v308 = vpack.c.b16 %v268, %v264
    %v309 = vpack.c.b16 %v269, %v265
    %v310 = vpack.c.b16 %v274, %v270
    %v311 = vpack.c.b16 %v275, %v271
    %v312 = vpack.c.b16 %v276, %v272
    %v313 = vpack.c.b16 %v277, %v273
    %v314 = vpack.c.b16 %v282, %v278
    %v315 = vpack.c.b16 %v283, %v279
    %v316 = vpack.c.b16 %v284, %v280
    %v317 = vpack.c.b16 %v285, %v281
    %350 = vmatprep.subr.bf16.mxu0 %v287
    %351 = vmatpush1.bf16.msra.mxu0 %v286
    %352 = vmatprep.subr.bf16.mxu0 %v291
    %353 = vmatpush1.bf16.msra.mxu0 %v290
    %354 = vmatprep.subr.bf16.mxu0 %v295
    %355 = vmatpush1.bf16.msra.mxu0 %v294
    %356 = vmatprep.subr.bf16.mxu0 %v299
    %357 = vmatpush1.bf16.msra.mxu0 %v298
    %358 = vmatprep.subr.bf16.mxu0 %v303
    %359 = vmatpush1.bf16.msra.mxu0 %v302
    %360 = vmatprep.subr.bf16.mxu0 %v307
    %361 = vmatpush1.bf16.msra.mxu0 %v306
    %362 = vmatprep.subr.bf16.mxu0 %v311
    %363 = vmatpush1.bf16.msra.mxu0 %v310
    %364 = vmatprep.subr.bf16.mxu0 %v315
    %365 = vmatpush1.bf16.msra.mxu0 %v314
    %366 = vmatprep.subr.bf16.mxu0 0
    %367 = vmatpush1.bf16.msra.mxu0 0
    %368 = vmatprep.subr.bf16.mxu0 0
    %369 = vmatpush1.bf16.msra.mxu0 0
    %370 = vmatprep.subr.bf16.mxu0 0
    %371 = vmatpush1.bf16.msra.mxu0 0
    %372 = vmatprep.subr.bf16.mxu0 0
    %373 = vmatpush1.bf16.msra.mxu0 0
    %374 = vmatprep.subr.bf16.mxu0 0
    %375 = vmatpush1.bf16.msra.mxu0 0
    %376 = vmatprep.subr.bf16.mxu0 0
    %377 = vmatpush1.bf16.msra.mxu0 0
    %378 = vmatprep.subr.bf16.mxu0 0
    %379 = vmatpush1.bf16.msra.mxu0 0
    %380 = vmatprep.subr.bf16.mxu0 0
    %381 = vmatpush1.bf16.msra.mxu0 0
    %382 = vmatprep.mubr.bf16.mxu0 0
    %383 = vmatmul.mubr.bf16.gmra.mrb[0].mxu0 %v135
    %v384 = vpop.f32.mrb[0].mxu0
    %v385 = vadd.f32 %v173, %v384
    %v386 = vpop.f32.mrb[0].mxu0
    %v387 = vadd.f32 %v177, %v386
    %v388 = vpop.f32.mrb[0].mxu0
    %v389 = vadd.f32 %v173, %v388
    %v390 = vpop.f32.mrb[0].mxu0
    %v391 = vadd.f32 %v177, %v390
    %392 = vdwg.mxu0
    %393 = vmatprep.subr.bf16.mxu0 %v289
    %394 = vmatpush1.bf16.msra.mxu0 %v288
    %395 = vmatprep.subr.bf16.mxu0 %v293
    %396 = vmatpush1.bf16.msra.mxu0 %v292
    %397 = vmatprep.subr.bf16.mxu0 %v297
    %398 = vmatpush1.bf16.msra.mxu0 %v296
    %399 = vmatprep.subr.bf16.mxu0 %v301
    %400 = vmatpush1.bf16.msra.mxu0 %v300
    %401 = vmatprep.subr.bf16.mxu0 %v305
    %402 = vmatpush1.bf16.msra.mxu0 %v304
    %403 = vmatprep.subr.bf16.mxu0 %v309
    %404 = vmatpush1.bf16.msra.mxu0 %v308
    %405 = vmatprep.subr.bf16.mxu0 %v313
    %406 = vmatpush1.bf16.msra.mxu0 %v312
    %407 = vmatprep.subr.bf16.mxu0 %v317
    %408 = vmatpush1.bf16.msra.mxu0 %v316
    %409 = vmatprep.subr.bf16.mxu0 0
    %410 = vmatpush1.bf16.msra.mxu0 0
    %411 = vmatprep.subr.bf16.mxu0 0
    %412 = vmatpush1.bf16.msra.mxu0 0
    %413 = vmatprep.subr.bf16.mxu0 0
    %414 = vmatpush1.bf16.msra.mxu0 0
    %415 = vmatprep.subr.bf16.mxu0 0
    %416 = vmatpush1.bf16.msra.mxu0 0
    %417 = vmatprep.subr.bf16.mxu0 0
    %418 = vmatpush1.bf16.msra.mxu0 0
    %419 = vmatprep.subr.bf16.mxu0 0
    %420 = vmatpush1.bf16.msra.mxu0 0
    %421 = vmatprep.subr.bf16.mxu0 0
    %422 = vmatpush1.bf16.msra.mxu0 0
    %423 = vmatprep.subr.bf16.mxu0 0
    %424 = vmatpush1.bf16.msra.mxu0 0
    %425 = vmatprep.mubr.bf16.mxu0 0
    %426 = vmatmul.mubr.bf16.gmra.mrb[0].mxu0 %v135
    %v427 = vpop.f32.mrb[0].mxu0
    %v428 = vadd.f32 %v181, %v427
    %v429 = vpop.f32.mrb[0].mxu0
    %v430 = vadd.f32 %v185, %v429
    %v431 = vpop.f32.mrb[0].mxu0
    %v432 = vadd.f32 %v181, %v431
    %v433 = vpop.f32.mrb[0].mxu0
    %v434 = vadd.f32 %v185, %v433
    %435 = vdwg.mxu0
    %v436 = vmax.f32 %v385, 0.0
    %v437 = vmax.f32 %v387, 0.0
    %v438 = vmax.f32 %v428, 0.0
    %v439 = vmax.f32 %v430, 0.0
    %v440 = vmax.f32 %v389, 0.0
    %v441 = vmax.f32 %v391, 0.0
    %v442 = vmax.f32 %v432, 0.0
    %v443 = vmax.f32 %v434, 0.0
    %v444 = vpack.c.bf16 %v440, %v436
    %v445 = vpack.c.bf16 %v441, %v437
    %v446 = vpack.c.bf16 %v442, %v438
    %v447 = vpack.c.bf16 %v443, %v439
    %v448 = vld [vmem:[#allocation5] sm:$0xff]
    %v449 = vld [vmem:[#allocation5 + $0x8] sm:$0xff]
    %v450 = vld [vmem:[#allocation5 + $0x10] sm:$0xff]
    %v451 = vld [vmem:[#allocation5 + $0x18] sm:$0xff]
    %v452 = vld [vmem:[#allocation5 + $0x20] sm:$0xff]
    %v453 = vld [vmem:[#allocation5 + $0x28] sm:$0xff]
    %v454 = vld [vmem:[#allocation5 + $0x30] sm:$0xff]
    %v455 = vld [vmem:[#allocation5 + $0x38] sm:$0xff]
    %v456 = vld [vmem:[#allocation5 + $0x40] sm:$0xff]
    %v457 = vld [vmem:[#allocation5 + $0x48] sm:$0xff]
    %v458 = vld [vmem:[#allocation5 + $0x50] sm:$0xff]
    %v459 = vld [vmem:[#allocation5 + $0x58] sm:$0xff]
    %v460 = vld [vmem:[#allocation5 + $0x60] sm:$0xff]
    %v461 = vld [vmem:[#allocation5 + $0x68] sm:$0xff]
    %v462 = vld [vmem:[#allocation5 + $0x70] sm:$0xff]
    %v463 = vld [vmem:[#allocation5 + $0x78] sm:$0xff]
    %v464 = vld [vmem:[#allocation5 + $0x80] sm:$0xff]
    %v465 = vld [vmem:[#allocation5 + $0x88] sm:$0xff]
    %v466 = vld [vmem:[#allocation5 + $0x90] sm:$0xff]
    %v467 = vld [vmem:[#allocation5 + $0x98] sm:$0xff]
    %v468 = vld [vmem:[#allocation5 + $0xa0] sm:$0xff]
    %v469 = vld [vmem:[#allocation5 + $0xa8] sm:$0xff]
    %v470 = vld [vmem:[#allocation5 + $0xb0] sm:$0xff]
    %v471 = vld [vmem:[#allocation5 + $0xb8] sm:$0xff]
    %v472 = vld [vmem:[#allocation5 + $0xc0] sm:$0xff]
    %v473 = vld [vmem:[#allocation5 + $0xc8] sm:$0xff]
    %v474 = vld [vmem:[#allocation5 + $0xd0] sm:$0xff]
    %v475 = vld [vmem:[#allocation5 + $0xd8] sm:$0xff]
    %v476 = vld [vmem:[#allocation5 + $0xe0] sm:$0xff]
    %v477 = vld [vmem:[#allocation5 + $0xe8] sm:$0xff]
    %v478 = vld [vmem:[#allocation5 + $0xf0] sm:$0xff]
    %v479 = vld [vmem:[#allocation5 + $0xf8] sm:$0xff]
    %v480 = vld [vmem:[#allocation5 + $0x100] sm:$0xff]
    %v481 = vld [vmem:[#allocation5 + $0x108] sm:$0xff]
    %v482 = vld [vmem:[#allocation5 + $0x110] sm:$0xff]
    %v483 = vld [vmem:[#allocation5 + $0x118] sm:$0xff]
    %v484 = vld [vmem:[#allocation5 + $0x120] sm:$0xff]
    %v485 = vld [vmem:[#allocation5 + $0x128] sm:$0xff]
    %v486 = vld [vmem:[#allocation5 + $0x130] sm:$0xff]
    %v487 = vld [vmem:[#allocation5 + $0x138] sm:$0xff]
    %v488 = vld [vmem:[#allocation5 + $0x140] sm:$0xff]
    %v489 = vld [vmem:[#allocation5 + $0x148] sm:$0xff]
    %v490 = vld [vmem:[#allocation5 + $0x150] sm:$0xff]
    %v491 = vld [vmem:[#allocation5 + $0x158] sm:$0xff]
    %v492 = vld [vmem:[#allocation5 + $0x160] sm:$0xff]
    %v493 = vld [vmem:[#allocation5 + $0x168] sm:$0xff]
    %v494 = vld [vmem:[#allocation5 + $0x170] sm:$0xff]
    %v495 = vld [vmem:[#allocation5 + $0x178] sm:$0xff]
    %v496 = vld [vmem:[#allocation5 + $0x180] sm:$0xff]
    %v497 = vld [vmem:[#allocation5 + $0x188] sm:$0xff]
    %v498 = vld [vmem:[#allocation5 + $0x190] sm:$0xff]
    %v499 = vld [vmem:[#allocation5 + $0x198] sm:$0xff]
    %v500 = vld [vmem:[#allocation5 + $0x1a0] sm:$0xff]
    %v501 = vld [vmem:[#allocation5 + $0x1a8] sm:$0xff]
    %v502 = vld [vmem:[#allocation5 + $0x1b0] sm:$0xff]
    %v503 = vld [vmem:[#allocation5 + $0x1b8] sm:$0xff]
    %v504 = vld [vmem:[#allocation5 + $0x1c0] sm:$0xff]
    %v505 = vld [vmem:[#allocation5 + $0x1c8] sm:$0xff]
    %v506 = vld [vmem:[#allocation5 + $0x1d0] sm:$0xff]
    %v507 = vld [vmem:[#allocation5 + $0x1d8] sm:$0xff]
    %v508 = vld [vmem:[#allocation5 + $0x1e0] sm:$0xff]
    %v509 = vld [vmem:[#allocation5 + $0x1e8] sm:$0xff]
    %v510 = vld [vmem:[#allocation5 + $0x1f0] sm:$0xff]
    %v511 = vld [vmem:[#allocation5 + $0x1f8] sm:$0xff]
    %v512 = vld [vmem:[%s6] sm:$0x3]
    %v514 = vlaneseq
    %v515 = vshrl.u32 %v514, 7
    %v516 = vsub.s32 0, %v515
    %v517 = vrot.slane %v512, %v516
    %v518 = vlaneseq
    %v519 = vshrl.u32 %v518, 7
    %v520 = vsub.s32 1, %v519
    %v521 = vrot.slane %v512, %v520
    %v588 = vunpack.c.l.b16 %v448
    %v589 = vunpack.c.h.b16 %v448
    %v590 = vunpack.c.l.b16 %v449
    %v591 = vunpack.c.h.b16 %v449
    %v592 = vunpack.c.l.b16 %v450
    %v593 = vunpack.c.h.b16 %v450
    %v594 = vunpack.c.l.b16 %v451
    %v595 = vunpack.c.h.b16 %v451
    %v596 = vunpack.c.l.b16 %v452
    %v597 = vunpack.c.h.b16 %v452
    %v598 = vunpack.c.l.b16 %v453
    %v599 = vunpack.c.h.b16 %v453
    %v600 = vunpack.c.l.b16 %v454
    %v601 = vunpack.c.h.b16 %v454
    %v602 = vunpack.c.l.b16 %v455
    %v603 = vunpack.c.h.b16 %v455
    %v604 = vunpack.c.l.b16 %v456
    %v605 = vunpack.c.h.b16 %v456
    %v606 = vunpack.c.l.b16 %v457
    %v607 = vunpack.c.h.b16 %v457
    %v608 = vunpack.c.l.b16 %v458
    %v609 = vunpack.c.h.b16 %v458
    %v610 = vunpack.c.l.b16 %v459
    %v611 = vunpack.c.h.b16 %v459
    %v612 = vunpack.c.l.b16 %v460
    %v613 = vunpack.c.h.b16 %v460
    %v614 = vunpack.c.l.b16 %v461
    %v615 = vunpack.c.h.b16 %v461
    %v616 = vunpack.c.l.b16 %v462
    %v617 = vunpack.c.h.b16 %v462
    %v618 = vunpack.c.l.b16 %v463
    %v619 = vunpack.c.h.b16 %v463
    %v620 = vunpack.c.l.b16 %v464
    %v621 = vunpack.c.h.b16 %v464
    %v622 = vunpack.c.l.b16 %v465
    %v623 = vunpack.c.h.b16 %v465
    %v624 = vunpack.c.l.b16 %v466
    %v625 = vunpack.c.h.b16 %v466
    %v626 = vunpack.c.l.b16 %v467
    %v627 = vunpack.c.h.b16 %v467
    %v628 = vunpack.c.l.b16 %v468
    %v629 = vunpack.c.h.b16 %v468
    %v630 = vunpack.c.l.b16 %v469
    %v631 = vunpack.c.h.b16 %v469
    %v632 = vunpack.c.l.b16 %v470
    %v633 = vunpack.c.h.b16 %v470
    %v634 = vunpack.c.l.b16 %v471
    %v635 = vunpack.c.h.b16 %v471
    %v636 = vunpack.c.l.b16 %v472
    %v637 = vunpack.c.h.b16 %v472
    %v638 = vunpack.c.l.b16 %v473
    %v639 = vunpack.c.h.b16 %v473
    %v640 = vunpack.c.l.b16 %v474
    %v641 = vunpack.c.h.b16 %v474
    %v642 = vunpack.c.l.b16 %v475
    %v643 = vunpack.c.h.b16 %v475
    %v644 = vunpack.c.l.b16 %v476
    %v645 = vunpack.c.h.b16 %v476
    %v646 = vunpack.c.l.b16 %v477
    %v647 = vunpack.c.h.b16 %v477
    %v648 = vunpack.c.l.b16 %v478
    %v649 = vunpack.c.h.b16 %v478
    %v650 = vunpack.c.l.b16 %v479
    %v651 = vunpack.c.h.b16 %v479
    %v652 = vunpack.c.l.b16 %v480
    %v653 = vunpack.c.h.b16 %v480
    %v654 = vunpack.c.l.b16 %v481
    %v655 = vunpack.c.h.b16 %v481
    %v656 = vunpack.c.l.b16 %v482
    %v657 = vunpack.c.h.b16 %v482
    %v658 = vunpack.c.l.b16 %v483
    %v659 = vunpack.c.h.b16 %v483
    %v660 = vunpack.c.l.b16 %v484
    %v661 = vunpack.c.h.b16 %v484
    %v662 = vunpack.c.l.b16 %v485
    %v663 = vunpack.c.h.b16 %v485
    %v664 = vunpack.c.l.b16 %v486
    %v665 = vunpack.c.h.b16 %v486
    %v666 = vunpack.c.l.b16 %v487
    %v667 = vunpack.c.h.b16 %v487
    %v668 = vunpack.c.l.b16 %v488
    %v669 = vunpack.c.h.b16 %v488
    %v670 = vunpack.c.l.b16 %v489
    %v671 = vunpack.c.h.b16 %v489
    %v672 = vunpack.c.l.b16 %v490
    %v673 = vunpack.c.h.b16 %v490
    %v674 = vunpack.c.l.b16 %v491
    %v675 = vunpack.c.h.b16 %v491
    %v676 = vunpack.c.l.b16 %v492
    %v677 = vunpack.c.h.b16 %v492
    %v678 = vunpack.c.l.b16 %v493
    %v679 = vunpack.c.h.b16 %v493
    %v680 = vunpack.c.l.b16 %v494
    %v681 = vunpack.c.h.b16 %v494
    %v682 = vunpack.c.l.b16 %v495
    %v683 = vunpack.c.h.b16 %v495
    %v684 = vunpack.c.l.b16 %v496
    %v685 = vunpack.c.h.b16 %v496
    %v686 = vunpack.c.l.b16 %v497
    %v687 = vunpack.c.h.b16 %v497
    %v688 = vunpack.c.l.b16 %v498
    %v689 = vunpack.c.h.b16 %v498
    %v690 = vunpack.c.l.b16 %v499
    %v691 = vunpack.c.h.b16 %v499
    %v692 = vunpack.c.l.b16 %v500
    %v693 = vunpack.c.h.b16 %v500
    %v694 = vunpack.c.l.b16 %v501
    %v695 = vunpack.c.h.b16 %v501
    %v696 = vunpack.c.l.b16 %v502
    %v697 = vunpack.c.h.b16 %v502
    %v698 = vunpack.c.l.b16 %v503
    %v699 = vunpack.c.h.b16 %v503
    %v700 = vunpack.c.l.b16 %v504
    %v701 = vunpack.c.h.b16 %v504
    %v702 = vunpack.c.l.b16 %v505
    %v703 = vunpack.c.h.b16 %v505
    %v704 = vunpack.c.l.b16 %v506
    %v705 = vunpack.c.h.b16 %v506
    %v706 = vunpack.c.l.b16 %v507
    %v707 = vunpack.c.h.b16 %v507
    %v708 = vunpack.c.l.b16 %v508
    %v709 = vunpack.c.h.b16 %v508
    %v710 = vunpack.c.l.b16 %v509
    %v711 = vunpack.c.h.b16 %v509
    %v712 = vunpack.c.l.b16 %v510
    %v713 = vunpack.c.h.b16 %v510
    %v714 = vunpack.c.l.b16 %v511
    %v715 = vunpack.c.h.b16 %v511
    %v716 = vpack.c.b16 %v590, %v588
    %v717 = vpack.c.b16 %v591, %v589
    %v718 = vpack.c.b16 %v594, %v592
    %v719 = vpack.c.b16 %v595, %v593
    %v720 = vpack.c.b16 %v598, %v596
    %v721 = vpack.c.b16 %v599, %v597
    %v722 = vpack.c.b16 %v602, %v600
    %v723 = vpack.c.b16 %v603, %v601
    %v724 = vpack.c.b16 %v606, %v604
    %v725 = vpack.c.b16 %v607, %v605
    %v726 = vpack.c.b16 %v610, %v608
    %v727 = vpack.c.b16 %v611, %v609
    %v728 = vpack.c.b16 %v614, %v612
    %v729 = vpack.c.b16 %v615, %v613
    %v730 = vpack.c.b16 %v618, %v616
    %v731 = vpack.c.b16 %v619, %v617
    %v732 = vpack.c.b16 %v622, %v620
    %v733 = vpack.c.b16 %v623, %v621
    %v734 = vpack.c.b16 %v626, %v624
    %v735 = vpack.c.b16 %v627, %v625
    %v736 = vpack.c.b16 %v630, %v628
    %v737 = vpack.c.b16 %v631, %v629
    %v738 = vpack.c.b16 %v634, %v632
    %v739 = vpack.c.b16 %v635, %v633
    %v740 = vpack.c.b16 %v638, %v636
    %v741 = vpack.c.b16 %v639, %v637
    %v742 = vpack.c.b16 %v642, %v640
    %v743 = vpack.c.b16 %v643, %v641
    %v744 = vpack.c.b16 %v646, %v644
    %v745 = vpack.c.b16 %v647, %v645
    %v746 = vpack.c.b16 %v650, %v648
    %v747 = vpack.c.b16 %v651, %v649
    %v748 = vpack.c.b16 %v654, %v652
    %v749 = vpack.c.b16 %v655, %v653
    %v750 = vpack.c.b16 %v658, %v656
    %v751 = vpack.c.b16 %v659, %v657
    %v752 = vpack.c.b16 %v662, %v660
    %v753 = vpack.c.b16 %v663, %v661
    %v754 = vpack.c.b16 %v666, %v664
    %v755 = vpack.c.b16 %v667, %v665
    %v756 = vpack.c.b16 %v670, %v668
    %v757 = vpack.c.b16 %v671, %v669
    %v758 = vpack.c.b16 %v674, %v672
    %v759 = vpack.c.b16 %v675, %v673
    %v760 = vpack.c.b16 %v678, %v676
    %v761 = vpack.c.b16 %v679, %v677
    %v762 = vpack.c.b16 %v682, %v680
    %v763 = vpack.c.b16 %v683, %v681
    %v764 = vpack.c.b16 %v686, %v684
    %v765 = vpack.c.b16 %v687, %v685
    %v766 = vpack.c.b16 %v690, %v688
    %v767 = vpack.c.b16 %v691, %v689
    %v768 = vpack.c.b16 %v694, %v692
    %v769 = vpack.c.b16 %v695, %v693
    %v770 = vpack.c.b16 %v698, %v696
    %v771 = vpack.c.b16 %v699, %v697
    %v772 = vpack.c.b16 %v702, %v700
    %v773 = vpack.c.b16 %v703, %v701
    %v774 = vpack.c.b16 %v706, %v704
    %v775 = vpack.c.b16 %v707, %v705
    %v776 = vpack.c.b16 %v710, %v708
    %v777 = vpack.c.b16 %v711, %v709
    %v778 = vpack.c.b16 %v714, %v712
    %v779 = vpack.c.b16 %v715, %v713
    %844 = vmatprep.subr.bf16.mxu0 %v717
    %845 = vmatpush1.bf16.msra.mxu0 %v716
    %846 = vmatprep.subr.bf16.mxu0 %v719
    %847 = vmatpush1.bf16.msra.mxu0 %v718
    %848 = vmatprep.subr.bf16.mxu0 %v721
    %849 = vmatpush1.bf16.msra.mxu0 %v720
    %850 = vmatprep.subr.bf16.mxu0 %v723
    %851 = vmatpush1.bf16.msra.mxu0 %v722
    %852 = vmatprep.subr.bf16.mxu0 %v725
    %853 = vmatpush1.bf16.msra.mxu0 %v724
    %854 = vmatprep.subr.bf16.mxu0 %v727
    %855 = vmatpush1.bf16.msra.mxu0 %v726
    %856 = vmatprep.subr.bf16.mxu0 %v729
    %857 = vmatpush1.bf16.msra.mxu0 %v728
    %858 = vmatprep.subr.bf16.mxu0 %v731
    %859 = vmatpush1.bf16.msra.mxu0 %v730
    %860 = vmatprep.subr.bf16.mxu0 %v733
    %861 = vmatpush1.bf16.msra.mxu0 %v732
    %862 = vmatprep.subr.bf16.mxu0 %v735
    %863 = vmatpush1.bf16.msra.mxu0 %v734
    %864 = vmatprep.subr.bf16.mxu0 %v737
    %865 = vmatpush1.bf16.msra.mxu0 %v736
    %866 = vmatprep.subr.bf16.mxu0 %v739
    %867 = vmatpush1.bf16.msra.mxu0 %v738
    %868 = vmatprep.subr.bf16.mxu0 %v741
    %869 = vmatpush1.bf16.msra.mxu0 %v740
    %870 = vmatprep.subr.bf16.mxu0 %v743
    %871 = vmatpush1.bf16.msra.mxu0 %v742
    %872 = vmatprep.subr.bf16.mxu0 %v745
    %873 = vmatpush1.bf16.msra.mxu0 %v744
    %874 = vmatprep.subr.bf16.mxu0 %v747
    %875 = vmatpush1.bf16.msra.mxu0 %v746
    %876 = vmatprep.mubr.bf16.mxu0 %v445
    %877 = vmatmul.mubr.bf16.gmra.mrb[0].mxu0 %v444
    %v878 = vpop.f32.mrb[0].mxu0
    %v879 = vadd.f32 %v517, %v878
    %v880 = vpop.f32.mrb[0].mxu0
    %v881 = vadd.f32 %v521, %v880
    %v882 = vpop.f32.mrb[0].mxu0
    %v883 = vadd.f32 %v517, %v882
    %v884 = vpop.f32.mrb[0].mxu0
    %v885 = vadd.f32 %v521, %v884
    %886 = vdwg.mxu0
    %887 = vmatprep.subr.bf16.mxu0 %v749
    %888 = vmatpush1.bf16.msra.mxu0 %v748
    %889 = vmatprep.subr.bf16.mxu0 %v751
    %890 = vmatpush1.bf16.msra.mxu0 %v750
    %891 = vmatprep.subr.bf16.mxu0 %v753
    %892 = vmatpush1.bf16.msra.mxu0 %v752
    %893 = vmatprep.subr.bf16.mxu0 %v755
    %894 = vmatpush1.bf16.msra.mxu0 %v754
    %895 = vmatprep.subr.bf16.mxu0 %v757
    %896 = vmatpush1.bf16.msra.mxu0 %v756
    %897 = vmatprep.subr.bf16.mxu0 %v759
    %898 = vmatpush1.bf16.msra.mxu0 %v758
    %899 = vmatprep.subr.bf16.mxu0 %v761
    %900 = vmatpush1.bf16.msra.mxu0 %v760
    %901 = vmatprep.subr.bf16.mxu0 %v763
    %902 = vmatpush1.bf16.msra.mxu0 %v762
    %903 = vmatprep.subr.bf16.mxu0 %v765
    %904 = vmatpush1.bf16.msra.mxu0 %v764
    %905 = vmatprep.subr.bf16.mxu0 %v767
    %906 = vmatpush1.bf16.msra.mxu0 %v766
    %907 = vmatprep.subr.bf16.mxu0 %v769
    %908 = vmatpush1.bf16.msra.mxu0 %v768
    %909 = vmatprep.subr.bf16.mxu0 %v771
    %910 = vmatpush1.bf16.msra.mxu0 %v770
    %911 = vmatprep.subr.bf16.mxu0 %v773
    %912 = vmatpush1.bf16.msra.mxu0 %v772
    %913 = vmatprep.subr.bf16.mxu0 %v775
    %914 = vmatpush1.bf16.msra.mxu0 %v774
    %915 = vmatprep.subr.bf16.mxu0 %v777
    %916 = vmatpush1.bf16.msra.mxu0 %v776
    %917 = vmatprep.subr.bf16.mxu0 %v779
    %918 = vmatpush1.bf16.msra.mxu0 %v778
    %919 = vmatprep.mubr.bf16.mxu0 %v447
    %920 = vmatmul.mubr.bf16.gmra.mrb[0].mxu0 %v446
    %v921 = vpop.f32.mrb[0].mxu0
    %v922 = vadd.f32 %v879, %v921
    %v923 = vpop.f32.mrb[0].mxu0
    %v924 = vadd.f32 %v881, %v923
    %v925 = vpop.f32.mrb[0].mxu0
    %v926 = vadd.f32 %v883, %v925
    %v927 = vpop.f32.mrb[0].mxu0
    %v928 = vadd.f32 %v885, %v927
    %929 = vdwg.mxu0
    %v930 = vmax.f32 %v922, 0.0
    %v931 = vmax.f32 %v924, 0.0
    %v932 = vmax.f32 %v926, 0.0
    %v933 = vmax.f32 %v928, 0.0
    %v934 = vpack.c.bf16 %v932, %v930
    %v935 = vpack.c.bf16 %v933, %v931
    %v936 = vld [vmem:[%s7] sm:$0xf]
    %v937 = vld [vmem:[%s7 + $0x4] sm:$0xf]
    %v938 = vld [vmem:[%s7 + $0x8] sm:$0xf]
    %v939 = vld [vmem:[%s7 + $0xc] sm:$0xf]
    %v940 = vld [vmem:[%s7 + $0x10] sm:$0xf]
    %v941 = vld [vmem:[%s7 + $0x14] sm:$0xf]
    %v942 = vld [vmem:[%s7 + $0x18] sm:$0xf]
    %v943 = vld [vmem:[%s7 + $0x1c] sm:$0xf]
    %v944 = vld [vmem:[%s7 + $0x20] sm:$0xf]
    %v945 = vld [vmem:[%s7 + $0x24] sm:$0xf]
    %v946 = vld [vmem:[%s7 + $0x28] sm:$0xf]
    %v947 = vld [vmem:[%s7 + $0x2c] sm:$0xf]
    %v948 = vld [vmem:[%s7 + $0x30] sm:$0xf]
    %v949 = vld [vmem:[%s7 + $0x34] sm:$0xf]
    %v950 = vld [vmem:[%s7 + $0x38] sm:$0xf]
    %v951 = vld [vmem:[%s7 + $0x3c] sm:$0xf]
    %v952 = vld [vmem:[%s7 + $0x40] sm:$0xf]
    %v953 = vld [vmem:[%s7 + $0x44] sm:$0xf]
    %v954 = vld [vmem:[%s7 + $0x48] sm:$0xf]
    %v955 = vld [vmem:[%s7 + $0x4c] sm:$0xf]
    %v956 = vld [vmem:[%s7 + $0x50] sm:$0xf]
    %v957 = vld [vmem:[%s7 + $0x54] sm:$0xf]
    %v958 = vld [vmem:[%s7 + $0x58] sm:$0xf]
    %v959 = vld [vmem:[%s7 + $0x5c] sm:$0xf]
    %v960 = vld [vmem:[%s7 + $0x60] sm:$0xf]
    %v961 = vld [vmem:[%s7 + $0x64] sm:$0xf]
    %v962 = vld [vmem:[%s7 + $0x68] sm:$0xf]
    %v963 = vld [vmem:[%s7 + $0x6c] sm:$0xf]
    %v964 = vld [vmem:[%s7 + $0x70] sm:$0xf]
    %v965 = vld [vmem:[%s7 + $0x74] sm:$0xf]
    %v966 = vld [vmem:[%s7 + $0x78] sm:$0xf]
    %v967 = vld [vmem:[%s7 + $0x7c] sm:$0xf]
    %v968 = vld [vmem:[%s8] sm:$0x1]
    %v970 = vlaneseq
    %v971 = vshrl.u32 %v970, 7
    %v972 = vsub.s32 0, %v971
    %v973 = vrot.slane %v968, %v972
    %v1007 = vunpack.c.l.b16 %v936
    %v1008 = vunpack.c.l.b16 %v937
    %v1009 = vunpack.c.l.b16 %v938
    %v1010 = vunpack.c.l.b16 %v939
    %v1011 = vunpack.c.l.b16 %v940
    %v1012 = vunpack.c.l.b16 %v941
    %v1013 = vunpack.c.l.b16 %v942
    %v1014 = vunpack.c.l.b16 %v943
    %v1015 = vunpack.c.l.b16 %v944
    %v1016 = vunpack.c.l.b16 %v945
    %v1017 = vunpack.c.l.b16 %v946
    %v1018 = vunpack.c.l.b16 %v947
    %v1019 = vunpack.c.l.b16 %v948
    %v1020 = vunpack.c.l.b16 %v949
    %v1021 = vunpack.c.l.b16 %v950
    %v1022 = vunpack.c.l.b16 %v951
    %v1023 = vunpack.c.l.b16 %v952
    %v1024 = vunpack.c.l.b16 %v953
    %v1025 = vunpack.c.l.b16 %v954
    %v1026 = vunpack.c.l.b16 %v955
    %v1027 = vunpack.c.l.b16 %v956
    %v1028 = vunpack.c.l.b16 %v957
    %v1029 = vunpack.c.l.b16 %v958
    %v1030 = vunpack.c.l.b16 %v959
    %v1031 = vunpack.c.l.b16 %v960
    %v1032 = vunpack.c.l.b16 %v961
    %v1033 = vunpack.c.l.b16 %v962
    %v1034 = vunpack.c.l.b16 %v963
    %v1035 = vunpack.c.l.b16 %v964
    %v1036 = vunpack.c.l.b16 %v965
    %v1037 = vunpack.c.l.b16 %v966
    %v1038 = vunpack.c.l.b16 %v967
    %v1039 = vpack.c.b16 %v1008, %v1007
    %v1040 = vpack.c.b16 %v1010, %v1009
    %v1041 = vpack.c.b16 %v1012, %v1011
    %v1042 = vpack.c.b16 %v1014, %v1013
    %v1043 = vpack.c.b16 %v1016, %v1015
    %v1044 = vpack.c.b16 %v1018, %v1017
    %v1045 = vpack.c.b16 %v1020, %v1019
    %v1046 = vpack.c.b16 %v1022, %v1021
    %v1047 = vpack.c.b16 %v1024, %v1023
    %v1048 = vpack.c.b16 %v1026, %v1025
    %v1049 = vpack.c.b16 %v1028, %v1027
    %v1050 = vpack.c.b16 %v1030, %v1029
    %v1051 = vpack.c.b16 %v1032, %v1031
    %v1052 = vpack.c.b16 %v1034, %v1033
    %v1053 = vpack.c.b16 %v1036, %v1035
    %v1054 = vpack.c.b16 %v1038, %v1037
    %1071 = vmatprep.subr.bf16.mxu0 0
    %1072 = vmatpush1.bf16.msra.mxu0 %v1039
    %1073 = vmatprep.subr.bf16.mxu0 0
    %1074 = vmatpush1.bf16.msra.mxu0 %v1040
    %1075 = vmatprep.subr.bf16.mxu0 0
    %1076 = vmatpush1.bf16.msra.mxu0 %v1041
    %1077 = vmatprep.subr.bf16.mxu0 0
    %1078 = vmatpush1.bf16.msra.mxu0 %v1042
    %1079 = vmatprep.subr.bf16.mxu0 0
    %1080 = vmatpush1.bf16.msra.mxu0 %v1043
    %1081 = vmatprep.subr.bf16.mxu0 0
    %1082 = vmatpush1.bf16.msra.mxu0 %v1044
    %1083 = vmatprep.subr.bf16.mxu0 0
    %1084 = vmatpush1.bf16.msra.mxu0 %v1045
    %1085 = vmatprep.subr.bf16.mxu0 0
    %1086 = vmatpush1.bf16.msra.mxu0 %v1046
    %1087 = vmatprep.subr.bf16.mxu0 0
    %1088 = vmatpush1.bf16.msra.mxu0 %v1047
    %1089 = vmatprep.subr.bf16.mxu0 0
    %1090 = vmatpush1.bf16.msra.mxu0 %v1048
    %1091 = vmatprep.subr.bf16.mxu0 0
    %1092 = vmatpush1.bf16.msra.mxu0 %v1049
    %1093 = vmatprep.subr.bf16.mxu0 0
    %1094 = vmatpush1.bf16.msra.mxu0 %v1050
    %1095 = vmatprep.subr.bf16.mxu0 0
    %1096 = vmatpush1.bf16.msra.mxu0 %v1051
    %1097 = vmatprep.subr.bf16.mxu0 0
    %1098 = vmatpush1.bf16.msra.mxu0 %v1052
    %1099 = vmatprep.subr.bf16.mxu0 0
    %1100 = vmatpush1.bf16.msra.mxu0 %v1053
    %1101 = vmatprep.subr.bf16.mxu0 0
    %1102 = vmatpush1.bf16.msra.mxu0 %v1054
    %1103 = vmatprep.mubr.bf16.mxu0 %v935
    %1104 = vmatmul.mubr.bf16.gmra.mrb[0].mxu0 %v934
    %v1105 = vpop.f32.mrb[0].mxu0
    %v1106 = vadd.f32 %v973, %v1105
    %v1107 = vpop.f32.mrb[0].mxu0
    %v1108 = vpop.f32.mrb[0].mxu0
    %v1109 = vadd.f32 %v973, %v1108
    %v1110 = vpop.f32.mrb[0].mxu0
    %1111 = vdwg.mxu0
    %vm1112 = vcmask 130048
    %1113 = vst.msk [vmem:[#allocation7] sm:$0xff] %vm1112, %v1106
    %1114 = vst.msk [vmem:[#allocation7 + $0x8] sm:$0xff] %vm1112, %v1109
    // Predicated region
    $region46: #{tpu_custom_call.1} parent=1 // pred_check
      _
    $region47: #{tpu_custom_call.1} parent=1 // pred_check_branch
      %1116 = sbr.rel (0) target = $region49
    $region48: #{tpu_custom_call.1} parent=1 // pred_region
      %s1118 = ssub.s32 256, 256
      %1119 = vsyncadd [#allocation4], %s1118
      %s1120 = sshll.u32 [#allocation7], 4
      %s1121 = int_to_ptr.vmem [resolvable:$true] %s1120
      %1126 = dma.vmem_to_hbm [thread:$0]  %s1121, 256, %s9, [#allocation4], 128, 128, 8
    $region49: #{tpu_custom_call.1} parent=1 // pred_fallthru
      _
    // Predicated region
    $region50: #{tpu_custom_call.1} parent=1 // pred_check
      _
    $region51: #{tpu_custom_call.1} parent=1 // pred_check_branch
      %1128 = sbr.rel (0) target = $region53
    $region52: #{tpu_custom_call.1} parent=1 // pred_region
      %1129 = dma.done [#allocation4], 256
    $region53: #{tpu_custom_call.1} parent=1 // pred_fallthru
      _
    %1130 = vsyncpa [#allocation3], 1
    %1131 = vsyncpa [#allocation6], 1
    %1132 = vsyncpa [#allocation4], 1

</llo_original>
